<compile_context>
chip_gen: v6e
topology: v6e:2x2x1
jax: 0.10.0
libtpu: 0.0.40
codegen_flags: <defaults>
</compile_context>

<pallas_src>
import functools
import math

import jax
import jax.numpy as jnp
from jax.experimental import pallas as pl
from jax.experimental.pallas import tpu as pltpu

# ---------------- small BERT config (synthetic) ----------------
VOCAB = 50
TYPE_VOCAB = 2
MAX_POS = 16
HIDDEN = 32
NUM_LAYERS = 2
NUM_HEADS = 4
HEAD_DIM = HIDDEN // NUM_HEADS
INTERMEDIATE = 64
LN_EPS = 1e-12

BATCH = 2
SEQ = 8


# ---------------- in-kernel helpers ----------------
def _layernorm(h, g, b):
    mean = jnp.mean(h, axis=-1, keepdims=True)
    var = jnp.mean(jnp.square(h - mean), axis=-1, keepdims=True)
    return (h - mean) * jax.lax.rsqrt(var + LN_EPS) * g + b


def _gelu(x):
    # original BERT gelu: x * 0.5 * (1 + erf(x / sqrt(2)))
    return 0.5 * x * (1.0 + jax.lax.erf(x * (1.0 / math.sqrt(2.0))))


# ---------------- fused encoder kernel (grid axis = layer) ----------------
def _bert_encoder_kernel(emb_ref, mask_ref, emb_g_ref, emb_b_ref,
                         qkv_w_ref, qkv_b_ref,
                         ao_w_ref, ao_b_ref, ao_g_ref, ao_bb_ref,
                         i_w_ref, i_b_ref,
                         o_w_ref, o_b_ref, o_g_ref, o_bb_ref,
                         pool_w_ref, pool_b_ref,
                         pooled_ref,
                         h_ref, ctx_ref,
                         *, batch, seq):
    l = pl.program_id(0)
    n_layers = pl.num_programs(0)

    # Layer 0: embedding LayerNorm initializes the resident hidden state;
    # h_ref (VMEM scratch) persists across all layer grid steps.
    @pl.when(l == 0)
    def _init():
        h_ref[...] = _layernorm(emb_ref[...], emb_g_ref[...], emb_b_ref[...])

    x = h_ref[...]                                              # [B*S, H] f32

    # ---- fused QKV projection: one MXU matmul with bf16 [H, 3H] weight ----
    # 1/sqrt(head_dim) is already folded into the Q columns at init time.
    qkv = jnp.dot(x.astype(jnp.bfloat16), qkv_w_ref[...],
                  preferred_element_type=jnp.float32) + qkv_b_ref[...]   # [B*S, 3H] f32

    # Additive key mask, pre-shaped [B, 1, S] on the host; hoisted out of the
    # head loop (JAX does not CSE broadcast_in_dim).
    mask3 = mask_ref[...]

    # ---- self-attention: heads unrolled (small), batch handled as the bmm batch
    # dim; per-head contexts written into a VMEM slab (no concatenates). ----
    for hh in range(NUM_HEADS):
        c0 = hh * HEAD_DIM
        qh = qkv[:, c0:c0 + HEAD_DIM].reshape(batch, seq, HEAD_DIM)
        kh = qkv[:, HIDDEN + c0:HIDDEN + c0 + HEAD_DIM].reshape(batch, seq, HEAD_DIM)
        vh = qkv[:, 2 * HIDDEN + c0:2 * HIDDEN + c0 + HEAD_DIM].reshape(batch, seq, HEAD_DIM)

        s = jnp.einsum('bqd,bkd->bqk',
                       qh.astype(jnp.bfloat16), kh.astype(jnp.bfloat16),
                       preferred_element_type=jnp.float32)      # [B, S, S]
        s = s + mask3
        s = s - jnp.max(s, axis=-1, keepdims=True)
        p = jnp.exp(s)
        # approx reciprocal (EUP) - fine for inference, not bit-exact vs PyTorch.
        p = p * pl.reciprocal(jnp.sum(p, axis=-1, keepdims=True), approx=True)

        ctx_h = jnp.einsum('bqk,bkd->bqd',
                           p.astype(jnp.bfloat16), vh.astype(jnp.bfloat16),
                           preferred_element_type=jnp.float32)  # [B, S, Dh]
        ctx_ref[:, c0:c0 + HEAD_DIM] = ctx_h.reshape(batch * seq, HEAD_DIM)

    ctx = ctx_ref[...]                                          # [B*S, H] f32

    # ---- attention output dense + fused add & LayerNorm ----
    attn_out = jnp.dot(ctx.astype(jnp.bfloat16), ao_w_ref[...],
                       preferred_element_type=jnp.float32) + ao_b_ref[...]
    h1 = _layernorm(attn_out + x, ao_g_ref[...], ao_bb_ref[...])

    # ---- FFN: intermediate (gelu) -> output dense + fused add & LayerNorm ----
    inter = _gelu(jnp.dot(h1.astype(jnp.bfloat16), i_w_ref[...],
                          preferred_element_type=jnp.float32) + i_b_ref[...])
    ffn = jnp.dot(inter.astype(jnp.bfloat16), o_w_ref[...],
                  preferred_element_type=jnp.float32) + o_b_ref[...]
    h2 = _layernorm(ffn + h1, o_g_ref[...], o_bb_ref[...])

    h_ref[...] = h2

    # ---- pooler epilogue on the last layer: tanh(dense(first token)) ----
    @pl.when(l == n_layers - 1)
    def _pool():
        # Strided read of the CLS rows (0, seq, 2*seq, ...) - no gather/concat.
        first = h_ref[pl.ds(0, batch, stride=seq), :]           # [B, H]
        pooled = jnp.tanh(
            jnp.dot(first.astype(jnp.bfloat16), pool_w_ref[...],
                    preferred_element_type=jnp.float32) + pool_b_ref[...])
        pooled_ref[...] = pooled.astype(pooled_ref.dtype)


# ---------------- parameter init (deterministic, synthetic, pre-stacked) ----------------
def init_params(key):
    def nrm(k, shape):
        return 0.02 * jax.random.normal(k, shape, dtype=jnp.float32)

    H, I = HIDDEN, INTERMEDIATE
    inv_sqrt_dh = 1.0 / math.sqrt(HEAD_DIM)
    keys = iter(jax.random.split(key, 4 + NUM_LAYERS * 6))

    p = {
        "word_emb": nrm(next(keys), (VOCAB, H)),
        "pos_emb": nrm(next(keys), (MAX_POS, H)),
        "type_emb": nrm(next(keys), (TYPE_VOCAB, H)),
        "emb_ln_g": jnp.ones((1, H), jnp.float32),
        "emb_ln_b": jnp.zeros((1, H), jnp.float32),
        "pool_w": nrm(next(keys), (H, H)).astype(jnp.bfloat16),   # bf16 weight
        "pool_b": jnp.zeros((1, H), jnp.float32),
    }

    qkv_w, qkv_b = [], []
    ao_w, ao_b, ao_g, ao_beta = [], [], [], []
    i_w, i_b = [], []
    o_w, o_b, o_g, o_beta = [], [], [], []
    for _ in range(NUM_LAYERS):
        qw, kw, vw = (nrm(next(keys), (H, H)) for _ in range(3))
        # Fused QKV weight with 1/sqrt(head_dim) folded into Q columns once here.
        qkv_w.append(jnp.concatenate([qw * inv_sqrt_dh, kw, vw], axis=1)
                     .astype(jnp.bfloat16))                       # [H, 3H] bf16
        qb = jnp.zeros((1, 3 * H), jnp.float32)
        qb = qb.at[:, :H].multiply(inv_sqrt_dh)                   # scale Q bias too
        qkv_b.append(qb)
        ao_w.append(nrm(next(keys), (H, H)).astype(jnp.bfloat16))
        ao_b.append(jnp.zeros((1, H), jnp.float32))
        ao_g.append(jnp.ones((1, H), jnp.float32))
        ao_beta.append(jnp.zeros((1, H), jnp.float32))
        i_w.append(nrm(next(keys), (H, I)).astype(jnp.bfloat16))
        i_b.append(jnp.zeros((1, I), jnp.float32))
        o_w.append(nrm(next(keys), (I, H)).astype(jnp.bfloat16))
        o_b.append(jnp.zeros((1, H), jnp.float32))
        o_g.append(jnp.ones((1, H), jnp.float32))
        o_beta.append(jnp.zeros((1, H), jnp.float32))

    p.update({
        "qkv_w": jnp.stack(qkv_w), "qkv_b": jnp.stack(qkv_b),
        "ao_w": jnp.stack(ao_w), "ao_b": jnp.stack(ao_b),
        "ao_g": jnp.stack(ao_g), "ao_beta": jnp.stack(ao_beta),
        "i_w": jnp.stack(i_w), "i_b": jnp.stack(i_b),
        "o_w": jnp.stack(o_w), "o_b": jnp.stack(o_b),
        "o_g": jnp.stack(o_g), "o_beta": jnp.stack(o_beta),
    })
    return p


# ---------------- BERT forward: gather glue in JAX, encoder in one Pallas call ----------------
def bert_encoder_forward(params, txt, mask, segment):
    B, S = txt.shape
    H, I3, I, L = HIDDEN, 3 * HIDDEN, INTERMEDIATE, NUM_LAYERS
    BS = B * S

    # --- embeddings (gather is plain-JAX glue) ---
    we = jnp.take(params["word_emb"], txt, axis=0)               # [B,S,H]
    pe = params["pos_emb"][:S][None, :, :]                       # [1,S,H]
    te = jnp.take(params["type_emb"], segment, axis=0)           # [B,S,H]
    emb = (we + pe + te).reshape(BS, H).astype(jnp.float32)

    # --- extended attention mask, additive, pre-shaped [B,1,S] for the kernel ---
    mask_add = ((1.0 - mask.astype(jnp.float32)) * -10000.0)[:, None, :]

    const2 = lambda l: (0, 0)
    const3 = lambda l: (0, 0, 0)
    layer3 = lambda l: (l, 0, 0)
    sq = pl.Squeezed()

    grid_spec = pltpu.PrefetchScalarGridSpec(
        num_scalar_prefetch=0,
        grid=(L,),
        in_specs=[
            pl.BlockSpec((BS, H), const2),          # emb (f32)
            pl.BlockSpec((B, 1, S), const3),        # additive attention mask [B,1,S]
            pl.BlockSpec((1, H), const2),           # emb LN gamma
            pl.BlockSpec((1, H), const2),           # emb LN beta
            pl.BlockSpec((sq, H, I3), layer3),      # fused QKV weight  [L,H,3H] bf16
            pl.BlockSpec((sq, 1, I3), layer3),      # fused QKV bias    [L,1,3H]
            pl.BlockSpec((sq, H, H), layer3),       # attn-out weight (bf16)
            pl.BlockSpec((sq, 1, H), layer3),       # attn-out bias
            pl.BlockSpec((sq, 1, H), layer3),       # attn-out LN gamma
            pl.BlockSpec((sq, 1, H), layer3),       # attn-out LN beta
            pl.BlockSpec((sq, H, I), layer3),       # intermediate weight (bf16)
            pl.BlockSpec((sq, 1, I), layer3),       # intermediate bias
            pl.BlockSpec((sq, I, H), layer3),       # output weight (bf16)
            pl.BlockSpec((sq, 1, H), layer3),       # output bias
            pl.BlockSpec((sq, 1, H), layer3),       # output LN gamma
            pl.BlockSpec((sq, 1, H), layer3),       # output LN beta
            pl.BlockSpec((H, H), const2),           # pooler weight (bf16)
            pl.BlockSpec((1, H), const2),           # pooler bias
        ],
        out_specs=pl.BlockSpec((B, H), const2),
        scratch_shapes=[
            pltpu.VMEM((BS, H), jnp.float32),       # resident hidden state
            pltpu.VMEM((BS, H), jnp.float32),       # per-layer attention context slab
        ],
    )

    pooled = pl.pallas_call(
        functools.partial(_bert_encoder_kernel, batch=B, seq=S),
        out_shape=jax.ShapeDtypeStruct((B, H), jnp.float32),
        grid_spec=grid_spec,
        compiler_params=pltpu.CompilerParams(
            dimension_semantics=("arbitrary",),       # layers are strictly sequential
            vmem_limit_bytes=32 * 1024 * 1024,        # keep weight prefetch double-buffered
        ),
    )(emb, mask_add,
      params["emb_ln_g"], params["emb_ln_b"],
      params["qkv_w"], params["qkv_b"],
      params["ao_w"], params["ao_b"], params["ao_g"], params["ao_beta"],
      params["i_w"], params["i_b"],
      params["o_w"], params["o_b"], params["o_g"], params["o_beta"],
      params["pool_w"], params["pool_b"])
    return pooled                                                # [B, H]


if __name__ == "__main__":
    key = jax.random.PRNGKey(0)
    kp, kt = jax.random.split(key, 2)
    params = init_params(kp)

    txt = jax.random.randint(kt, (BATCH, SEQ), 0, VOCAB, dtype=jnp.int32)
    # attention mask: first tokens valid, tail padded (second sequence has 2 pad tokens)
    mask = (jnp.arange(SEQ)[None, :] < jnp.array([[SEQ], [SEQ - 2]])).astype(jnp.int32)
    segment = jnp.concatenate(
        [jnp.zeros((BATCH, SEQ // 2), jnp.int32), jnp.ones((BATCH, SEQ // 2), jnp.int32)],
        axis=1,
    )

    out = jax.jit(bert_encoder_forward)(params, txt, mask, segment)
    out = jax.block_until_ready(out)
    assert out.shape == (BATCH, HIDDEN) and out.dtype == jnp.float32
    assert bool(jnp.all(jnp.isfinite(out)))
    print("KERNEL_OK")
</pallas_src>

<mosaic_0001>
module attributes {stable_mosaic.version = 11 : i64} {
  func.func @_bert_encoder_kernel(%arg0: i32, %arg1: memref<16x32xf32, #tpu.memory_space<vmem>>, %arg2: memref<2x1x8xf32, #tpu.memory_space<vmem>>, %arg3: memref<1x32xf32, #tpu.memory_space<vmem>>, %arg4: memref<1x32xf32, #tpu.memory_space<vmem>>, %arg5: memref<1x32x96xbf16, #tpu.memory_space<vmem>>, %arg6: memref<1x1x96xf32, #tpu.memory_space<vmem>>, %arg7: memref<1x32x32xbf16, #tpu.memory_space<vmem>>, %arg8: memref<1x1x32xf32, #tpu.memory_space<vmem>>, %arg9: memref<1x1x32xf32, #tpu.memory_space<vmem>>, %arg10: memref<1x1x32xf32, #tpu.memory_space<vmem>>, %arg11: memref<1x32x64xbf16, #tpu.memory_space<vmem>>, %arg12: memref<1x1x64xf32, #tpu.memory_space<vmem>>, %arg13: memref<1x64x32xbf16, #tpu.memory_space<vmem>>, %arg14: memref<1x1x32xf32, #tpu.memory_space<vmem>>, %arg15: memref<1x1x32xf32, #tpu.memory_space<vmem>>, %arg16: memref<1x1x32xf32, #tpu.memory_space<vmem>>, %arg17: memref<32x32xbf16, #tpu.memory_space<vmem>>, %arg18: memref<1x32xf32, #tpu.memory_space<vmem>>, %arg19: memref<2x32xf32, #tpu.memory_space<vmem>>, %arg20: memref<16x32xf32, #tpu.memory_space<vmem>>, %arg21: memref<16x32xf32, #tpu.memory_space<vmem>>) attributes {dimension_semantics = [#tpu.dimension_semantics<arbitrary>], iteration_bounds = array<i64: 2>, scalar_prefetch = 0 : i64, scratch_operands = 2 : i64, tpu.core_type = #tpu.core_type<tc>, window_params = [{pipeline_mode = #tpu.pipeline_mode<synchronous>, transform_indices = @transform_0, window_bounds = array<i64: 16, 32>}, {pipeline_mode = #tpu.pipeline_mode<synchronous>, transform_indices = @transform_1, window_bounds = array<i64: 2, 1, 8>}, {pipeline_mode = #tpu.pipeline_mode<synchronous>, transform_indices = @transform_2, window_bounds = array<i64: 1, 32>}, {pipeline_mode = #tpu.pipeline_mode<synchronous>, transform_indices = @transform_3, window_bounds = array<i64: 1, 32>}, {transform_indices = @transform_4, window_bounds = array<i64: 1, 32, 96>}, {transform_indices = @transform_5, window_bounds = array<i64: 1, 1, 96>}, {transform_indices = @transform_6, window_bounds = array<i64: 1, 32, 32>}, {transform_indices = @transform_7, window_bounds = array<i64: 1, 1, 32>}, {transform_indices = @transform_8, window_bounds = array<i64: 1, 1, 32>}, {transform_indices = @transform_9, window_bounds = array<i64: 1, 1, 32>}, {transform_indices = @transform_10, window_bounds = array<i64: 1, 32, 64>}, {transform_indices = @transform_11, window_bounds = array<i64: 1, 1, 64>}, {transform_indices = @transform_12, window_bounds = array<i64: 1, 64, 32>}, {transform_indices = @transform_13, window_bounds = array<i64: 1, 1, 32>}, {transform_indices = @transform_14, window_bounds = array<i64: 1, 1, 32>}, {transform_indices = @transform_15, window_bounds = array<i64: 1, 1, 32>}, {pipeline_mode = #tpu.pipeline_mode<synchronous>, transform_indices = @transform_16, window_bounds = array<i64: 32, 32>}, {pipeline_mode = #tpu.pipeline_mode<synchronous>, transform_indices = @transform_17, window_bounds = array<i64: 1, 32>}, {pipeline_mode = #tpu.pipeline_mode<synchronous>, transform_indices = @transform_18, window_bounds = array<i64: 2, 32>}]} {
    %c0_i32 = arith.constant 0 : i32
    %0 = arith.cmpi eq, %arg0, %c0_i32 : i32
    %1 = arith.extui %0 : i1 to i32
    %c0_i32_0 = arith.constant 0 : i32
    %2 = arith.cmpi ne, %1, %c0_i32_0 : i32
    scf.if %2 {
      %c0_83 = arith.constant 0 : index
      %c0_84 = arith.constant 0 : index
      %208 = vector.load %arg1[%c0_83, %c0_84] : memref<16x32xf32, #tpu.memory_space<vmem>>, vector<16x32xf32>
      %c0_85 = arith.constant 0 : index
      %c0_86 = arith.constant 0 : index
      %209 = vector.load %arg3[%c0_85, %c0_86] : memref<1x32xf32, #tpu.memory_space<vmem>>, vector<1x32xf32>
      %c0_87 = arith.constant 0 : index
      %c0_88 = arith.constant 0 : index
      %210 = vector.load %arg4[%c0_87, %c0_88] : memref<1x32xf32, #tpu.memory_space<vmem>>, vector<1x32xf32>
      %cst_89 = arith.constant dense<0.000000e+00> : vector<16xf32>
      %211 = vector.multi_reduction <add>, %208, %cst_89 [1] : vector<16x32xf32> to vector<16xf32>
      %212 = vector.shape_cast %211 : vector<16xf32> to vector<16x1xf32>
      %cst_90 = arith.constant 3.200000e+01 : f32
      %213 = vector.broadcast %cst_90 : f32 to vector<16x1xf32>
      %214 = arith.divf %212, %213 : vector<16x1xf32>
      %215 = vector.broadcast %214 : vector<16x1xf32> to vector<16x32xf32>
      %216 = arith.subf %208, %215 : vector<16x32xf32>
      %217 = arith.mulf %216, %216 : vector<16x32xf32>
      %cst_91 = arith.constant dense<0.000000e+00> : vector<16xf32>
      %218 = vector.multi_reduction <add>, %217, %cst_91 [1] : vector<16x32xf32> to vector<16xf32>
      %219 = vector.shape_cast %218 : vector<16xf32> to vector<16x1xf32>
      %cst_92 = arith.constant 3.200000e+01 : f32
      %220 = vector.broadcast %cst_92 : f32 to vector<16x1xf32>
      %221 = arith.divf %219, %220 : vector<16x1xf32>
      %222 = vector.broadcast %214 : vector<16x1xf32> to vector<16x32xf32>
      %223 = arith.subf %208, %222 : vector<16x32xf32>
      %cst_93 = arith.constant 9.99999996E-13 : f32
      %224 = vector.broadcast %cst_93 : f32 to vector<16x1xf32>
      %225 = arith.addf %221, %224 : vector<16x1xf32>
      %226 = math.rsqrt %225 : vector<16x1xf32>
      %227 = vector.broadcast %226 : vector<16x1xf32> to vector<16x32xf32>
      %228 = arith.mulf %223, %227 : vector<16x32xf32>
      %229 = vector.broadcast %209 : vector<1x32xf32> to vector<16x32xf32>
      %230 = arith.mulf %228, %229 : vector<16x32xf32>
      %231 = vector.broadcast %210 : vector<1x32xf32> to vector<16x32xf32>
      %232 = arith.addf %230, %231 : vector<16x32xf32>
      %c0_94 = arith.constant 0 : index
      %c0_95 = arith.constant 0 : index
      %233 = vector.load %arg20[%c0_94, %c0_95] : memref<16x32xf32, #tpu.memory_space<vmem>>, vector<16x32xf32>
      tpu.vector_store %arg20[%c0_94, %c0_95], %232 {strides = array<i32>} : memref<16x32xf32, #tpu.memory_space<vmem>>, vector<16x32xf32>,
    } else {
    }
    %c0 = arith.constant 0 : index
    %c0_1 = arith.constant 0 : index
    %3 = vector.load %arg20[%c0, %c0_1] : memref<16x32xf32, #tpu.memory_space<vmem>>, vector<16x32xf32>
    %4 = arith.truncf %3 : vector<16x32xf32> to vector<16x32xbf16>
    %c0_2 = arith.constant 0 : index
    %c0_3 = arith.constant 0 : index
    %c0_4 = arith.constant 0 : index
    %5 = vector.load %arg5[%c0_2, %c0_3, %c0_4] : memref<1x32x96xbf16, #tpu.memory_space<vmem>>, vector<1x32x96xbf16>
    %6 = vector.shape_cast %5 : vector<1x32x96xbf16> to vector<32x96xbf16>
    %cst = arith.constant dense<0.000000e+00> : vector<16x96xf32>
    %7 = tpu.matmul %4, %6, %cst {dimension_numbers = #tpu.dot_dimension_numbers<[1], [0], [0], [1], [0, 0, 1, 1], [], []>} : vector<16x32xbf16>, vector<32x96xbf16>, vector<16x96xf32> -> vector<16x96xf32>
    %c0_5 = arith.constant 0 : index
    %c0_6 = arith.constant 0 : index
    %c0_7 = arith.constant 0 : index
    %8 = vector.load %arg6[%c0_5, %c0_6, %c0_7] : memref<1x1x96xf32, #tpu.memory_space<vmem>>, vector<1x1x96xf32>
    %9 = vector.shape_cast %8 : vector<1x1x96xf32> to vector<1x96xf32>
    %10 = vector.broadcast %9 : vector<1x96xf32> to vector<16x96xf32>
    %11 = arith.addf %7, %10 : vector<16x96xf32>
    %c0_8 = arith.constant 0 : index
    %c0_9 = arith.constant 0 : index
    %c0_10 = arith.constant 0 : index
    %12 = vector.load %arg2[%c0_8, %c0_9, %c0_10] : memref<2x1x8xf32, #tpu.memory_space<vmem>>, vector<2x1x8xf32>
    %13 = vector.extract_strided_slice %11 {offsets = [0, 0], sizes = [16, 8], strides = [1, 1]} : vector<16x96xf32> to vector<16x8xf32>
    %14 = vector.shape_cast %13 : vector<16x8xf32> to vector<2x8x8xf32>
    %15 = vector.extract_strided_slice %11 {offsets = [0, 32], sizes = [16, 8], strides = [1, 1]} : vector<16x96xf32> to vector<16x8xf32>
    %16 = vector.shape_cast %15 : vector<16x8xf32> to vector<2x8x8xf32>
    %17 = vector.extract_strided_slice %11 {offsets = [0, 64], sizes = [16, 8], strides = [1, 1]} : vector<16x96xf32> to vector<16x8xf32>
    %18 = vector.shape_cast %17 : vector<16x8xf32> to vector<2x8x8xf32>
    %19 = arith.truncf %14 : vector<2x8x8xf32> to vector<2x8x8xbf16>
    %20 = arith.truncf %16 : vector<2x8x8xf32> to vector<2x8x8xbf16>
    "tpu.trace_start"() <{level = 10 : i32, message = "bqd,bkd->bqk"}> : () -> ()
    %cst_11 = arith.constant dense<0.000000e+00> : vector<2x8x8xf32>
    %21 = tpu.matmul %19, %20, %cst_11 {dimension_numbers = #tpu.dot_dimension_numbers<[2], [2], [1], [1], [0, 0, 0, 1, 1, 1], [0], [0]>} : vector<2x8x8xbf16>, vector<2x8x8xbf16>, vector<2x8x8xf32> -> vector<2x8x8xf32>
    "tpu.trace_stop"() : () -> ()
    %22 = vector.broadcast %12 : vector<2x1x8xf32> to vector<2x8x8xf32>
    %23 = arith.addf %21, %22 : vector<2x8x8xf32>
    %cst_12 = arith.constant dense<0xFF800000> : vector<2x8xf32>
    %24 = vector.multi_reduction <maximumf>, %23, %cst_12 [2] : vector<2x8x8xf32> to vector<2x8xf32>
    %25 = vector.shape_cast %24 : vector<2x8xf32> to vector<2x8x1xf32>
    %26 = vector.broadcast %25 : vector<2x8x1xf32> to vector<2x8x8xf32>
    %27 = arith.subf %23, %26 : vector<2x8x8xf32>
    %28 = math.exp %27 : vector<2x8x8xf32>
    %cst_13 = arith.constant dense<0.000000e+00> : vector<2x8xf32>
    %29 = vector.multi_reduction <add>, %28, %cst_13 [2] : vector<2x8x8xf32> to vector<2x8xf32>
    %30 = vector.shape_cast %29 : vector<2x8xf32> to vector<2x8x1xf32>
    %31 = tpu.reciprocal %30 {approx = true} : vector<2x8x1xf32> -> vector<2x8x1xf32>
    %32 = vector.broadcast %31 : vector<2x8x1xf32> to vector<2x8x8xf32>
    %33 = arith.mulf %28, %32 : vector<2x8x8xf32>
    %34 = arith.truncf %33 : vector<2x8x8xf32> to vector<2x8x8xbf16>
    %35 = arith.truncf %18 : vector<2x8x8xf32> to vector<2x8x8xbf16>
    "tpu.trace_start"() <{level = 10 : i32, message = "bqk,bkd->bqd"}> : () -> ()
    %cst_14 = arith.constant dense<0.000000e+00> : vector<2x8x8xf32>
    %36 = tpu.matmul %34, %35, %cst_14 {dimension_numbers = #tpu.dot_dimension_numbers<[2], [1], [1], [2], [0, 0, 0, 1, 1, 2], [0], [0]>} : vector<2x8x8xbf16>, vector<2x8x8xbf16>, vector<2x8x8xf32> -> vector<2x8x8xf32>
    "tpu.trace_stop"() : () -> ()
    %37 = vector.shape_cast %36 : vector<2x8x8xf32> to vector<16x8xf32>
    %c0_15 = arith.constant 0 : index
    %c0_16 = arith.constant 0 : index
    %38 = vector.load %arg21[%c0_15, %c0_16] : memref<16x32xf32, #tpu.memory_space<vmem>>, vector<16x8xf32>
    tpu.vector_store %arg21[%c0_15, %c0_16], %37 {strides = array<i32>} : memref<16x32xf32, #tpu.memory_space<vmem>>, vector<16x8xf32>,
    %39 = vector.extract_strided_slice %11 {offsets = [0, 8], sizes = [16, 8], strides = [1, 1]} : vector<16x96xf32> to vector<16x8xf32>
    %40 = vector.shape_cast %39 : vector<16x8xf32> to vector<2x8x8xf32>
    %41 = vector.extract_strided_slice %11 {offsets = [0, 40], sizes = [16, 8], strides = [1, 1]} : vector<16x96xf32> to vector<16x8xf32>
    %42 = vector.shape_cast %41 : vector<16x8xf32> to vector<2x8x8xf32>
    %43 = vector.extract_strided_slice %11 {offsets = [0, 72], sizes = [16, 8], strides = [1, 1]} : vector<16x96xf32> to vector<16x8xf32>
    %44 = vector.shape_cast %43 : vector<16x8xf32> to vector<2x8x8xf32>
    %45 = arith.truncf %40 : vector<2x8x8xf32> to vector<2x8x8xbf16>
    %46 = arith.truncf %42 : vector<2x8x8xf32> to vector<2x8x8xbf16>
    "tpu.trace_start"() <{level = 10 : i32, message = "bqd,bkd->bqk"}> : () -> ()
    %cst_17 = arith.constant dense<0.000000e+00> : vector<2x8x8xf32>
    %47 = tpu.matmul %45, %46, %cst_17 {dimension_numbers = #tpu.dot_dimension_numbers<[2], [2], [1], [1], [0, 0, 0, 1, 1, 1], [0], [0]>} : vector<2x8x8xbf16>, vector<2x8x8xbf16>, vector<2x8x8xf32> -> vector<2x8x8xf32>
    "tpu.trace_stop"() : () -> ()
    %48 = vector.broadcast %12 : vector<2x1x8xf32> to vector<2x8x8xf32>
    %49 = arith.addf %47, %48 : vector<2x8x8xf32>
    %cst_18 = arith.constant dense<0xFF800000> : vector<2x8xf32>
    %50 = vector.multi_reduction <maximumf>, %49, %cst_18 [2] : vector<2x8x8xf32> to vector<2x8xf32>
    %51 = vector.shape_cast %50 : vector<2x8xf32> to vector<2x8x1xf32>
    %52 = vector.broadcast %51 : vector<2x8x1xf32> to vector<2x8x8xf32>
    %53 = arith.subf %49, %52 : vector<2x8x8xf32>
    %54 = math.exp %53 : vector<2x8x8xf32>
    %cst_19 = arith.constant dense<0.000000e+00> : vector<2x8xf32>
    %55 = vector.multi_reduction <add>, %54, %cst_19 [2] : vector<2x8x8xf32> to vector<2x8xf32>
    %56 = vector.shape_cast %55 : vector<2x8xf32> to vector<2x8x1xf32>
    %57 = tpu.reciprocal %56 {approx = true} : vector<2x8x1xf32> -> vector<2x8x1xf32>
    %58 = vector.broadcast %57 : vector<2x8x1xf32> to vector<2x8x8xf32>
    %59 = arith.mulf %54, %58 : vector<2x8x8xf32>
    %60 = arith.truncf %59 : vector<2x8x8xf32> to vector<2x8x8xbf16>
    %61 = arith.truncf %44 : vector<2x8x8xf32> to vector<2x8x8xbf16>
    "tpu.trace_start"() <{level = 10 : i32, message = "bqk,bkd->bqd"}> : () -> ()
    %cst_20 = arith.constant dense<0.000000e+00> : vector<2x8x8xf32>
    %62 = tpu.matmul %60, %61, %cst_20 {dimension_numbers = #tpu.dot_dimension_numbers<[2], [1], [1], [2], [0, 0, 0, 1, 1, 2], [0], [0]>} : vector<2x8x8xbf16>, vector<2x8x8xbf16>, vector<2x8x8xf32> -> vector<2x8x8xf32>
    "tpu.trace_stop"() : () -> ()
    %63 = vector.shape_cast %62 : vector<2x8x8xf32> to vector<16x8xf32>
    %c0_21 = arith.constant 0 : index
    %c8 = arith.constant 8 : index
    %64 = vector.load %arg21[%c0_21, %c8] : memref<16x32xf32, #tpu.memory_space<vmem>>, vector<16x8xf32>
    tpu.vector_store %arg21[%c0_21, %c8], %63 {strides = array<i32>} : memref<16x32xf32, #tpu.memory_space<vmem>>, vector<16x8xf32>,
    %65 = vector.extract_strided_slice %11 {offsets = [0, 16], sizes = [16, 8], strides = [1, 1]} : vector<16x96xf32> to vector<16x8xf32>
    %66 = vector.shape_cast %65 : vector<16x8xf32> to vector<2x8x8xf32>
    %67 = vector.extract_strided_slice %11 {offsets = [0, 48], sizes = [16, 8], strides = [1, 1]} : vector<16x96xf32> to vector<16x8xf32>
    %68 = vector.shape_cast %67 : vector<16x8xf32> to vector<2x8x8xf32>
    %69 = vector.extract_strided_slice %11 {offsets = [0, 80], sizes = [16, 8], strides = [1, 1]} : vector<16x96xf32> to vector<16x8xf32>
    %70 = vector.shape_cast %69 : vector<16x8xf32> to vector<2x8x8xf32>
    %71 = arith.truncf %66 : vector<2x8x8xf32> to vector<2x8x8xbf16>
    %72 = arith.truncf %68 : vector<2x8x8xf32> to vector<2x8x8xbf16>
    "tpu.trace_start"() <{level = 10 : i32, message = "bqd,bkd->bqk"}> : () -> ()
    %cst_22 = arith.constant dense<0.000000e+00> : vector<2x8x8xf32>
    %73 = tpu.matmul %71, %72, %cst_22 {dimension_numbers = #tpu.dot_dimension_numbers<[2], [2], [1], [1], [0, 0, 0, 1, 1, 1], [0], [0]>} : vector<2x8x8xbf16>, vector<2x8x8xbf16>, vector<2x8x8xf32> -> vector<2x8x8xf32>
    "tpu.trace_stop"() : () -> ()
    %74 = vector.broadcast %12 : vector<2x1x8xf32> to vector<2x8x8xf32>
    %75 = arith.addf %73, %74 : vector<2x8x8xf32>
    %cst_23 = arith.constant dense<0xFF800000> : vector<2x8xf32>
    %76 = vector.multi_reduction <maximumf>, %75, %cst_23 [2] : vector<2x8x8xf32> to vector<2x8xf32>
    %77 = vector.shape_cast %76 : vector<2x8xf32> to vector<2x8x1xf32>
    %78 = vector.broadcast %77 : vector<2x8x1xf32> to vector<2x8x8xf32>
    %79 = arith.subf %75, %78 : vector<2x8x8xf32>
    %80 = math.exp %79 : vector<2x8x8xf32>
    %cst_24 = arith.constant dense<0.000000e+00> : vector<2x8xf32>
    %81 = vector.multi_reduction <add>, %80, %cst_24 [2] : vector<2x8x8xf32> to vector<2x8xf32>
    %82 = vector.shape_cast %81 : vector<2x8xf32> to vector<2x8x1xf32>
    %83 = tpu.reciprocal %82 {approx = true} : vector<2x8x1xf32> -> vector<2x8x1xf32>
    %84 = vector.broadcast %83 : vector<2x8x1xf32> to vector<2x8x8xf32>
    %85 = arith.mulf %80, %84 : vector<2x8x8xf32>
    %86 = arith.truncf %85 : vector<2x8x8xf32> to vector<2x8x8xbf16>
    %87 = arith.truncf %70 : vector<2x8x8xf32> to vector<2x8x8xbf16>
    "tpu.trace_start"() <{level = 10 : i32, message = "bqk,bkd->bqd"}> : () -> ()
    %cst_25 = arith.constant dense<0.000000e+00> : vector<2x8x8xf32>
    %88 = tpu.matmul %86, %87, %cst_25 {dimension_numbers = #tpu.dot_dimension_numbers<[2], [1], [1], [2], [0, 0, 0, 1, 1, 2], [0], [0]>} : vector<2x8x8xbf16>, vector<2x8x8xbf16>, vector<2x8x8xf32> -> vector<2x8x8xf32>
    "tpu.trace_stop"() : () -> ()
    %89 = vector.shape_cast %88 : vector<2x8x8xf32> to vector<16x8xf32>
    %c0_26 = arith.constant 0 : index
    %c16 = arith.constant 16 : index
    %90 = vector.load %arg21[%c0_26, %c16] : memref<16x32xf32, #tpu.memory_space<vmem>>, vector<16x8xf32>
    tpu.vector_store %arg21[%c0_26, %c16], %89 {strides = array<i32>} : memref<16x32xf32, #tpu.memory_space<vmem>>, vector<16x8xf32>,
    %91 = vector.extract_strided_slice %11 {offsets = [0, 24], sizes = [16, 8], strides = [1, 1]} : vector<16x96xf32> to vector<16x8xf32>
    %92 = vector.shape_cast %91 : vector<16x8xf32> to vector<2x8x8xf32>
    %93 = vector.extract_strided_slice %11 {offsets = [0, 56], sizes = [16, 8], strides = [1, 1]} : vector<16x96xf32> to vector<16x8xf32>
    %94 = vector.shape_cast %93 : vector<16x8xf32> to vector<2x8x8xf32>
    %95 = vector.extract_strided_slice %11 {offsets = [0, 88], sizes = [16, 8], strides = [1, 1]} : vector<16x96xf32> to vector<16x8xf32>
    %96 = vector.shape_cast %95 : vector<16x8xf32> to vector<2x8x8xf32>
    %97 = arith.truncf %92 : vector<2x8x8xf32> to vector<2x8x8xbf16>
    %98 = arith.truncf %94 : vector<2x8x8xf32> to vector<2x8x8xbf16>
    "tpu.trace_start"() <{level = 10 : i32, message = "bqd,bkd->bqk"}> : () -> ()
    %cst_27 = arith.constant dense<0.000000e+00> : vector<2x8x8xf32>
    %99 = tpu.matmul %97, %98, %cst_27 {dimension_numbers = #tpu.dot_dimension_numbers<[2], [2], [1], [1], [0, 0, 0, 1, 1, 1], [0], [0]>} : vector<2x8x8xbf16>, vector<2x8x8xbf16>, vector<2x8x8xf32> -> vector<2x8x8xf32>
    "tpu.trace_stop"() : () -> ()
    %100 = vector.broadcast %12 : vector<2x1x8xf32> to vector<2x8x8xf32>
    %101 = arith.addf %99, %100 : vector<2x8x8xf32>
    %cst_28 = arith.constant dense<0xFF800000> : vector<2x8xf32>
    %102 = vector.multi_reduction <maximumf>, %101, %cst_28 [2] : vector<2x8x8xf32> to vector<2x8xf32>
    %103 = vector.shape_cast %102 : vector<2x8xf32> to vector<2x8x1xf32>
    %104 = vector.broadcast %103 : vector<2x8x1xf32> to vector<2x8x8xf32>
    %105 = arith.subf %101, %104 : vector<2x8x8xf32>
    %106 = math.exp %105 : vector<2x8x8xf32>
    %cst_29 = arith.constant dense<0.000000e+00> : vector<2x8xf32>
    %107 = vector.multi_reduction <add>, %106, %cst_29 [2] : vector<2x8x8xf32> to vector<2x8xf32>
    %108 = vector.shape_cast %107 : vector<2x8xf32> to vector<2x8x1xf32>
    %109 = tpu.reciprocal %108 {approx = true} : vector<2x8x1xf32> -> vector<2x8x1xf32>
    %110 = vector.broadcast %109 : vector<2x8x1xf32> to vector<2x8x8xf32>
    %111 = arith.mulf %106, %110 : vector<2x8x8xf32>
    %112 = arith.truncf %111 : vector<2x8x8xf32> to vector<2x8x8xbf16>
    %113 = arith.truncf %96 : vector<2x8x8xf32> to vector<2x8x8xbf16>
    "tpu.trace_start"() <{level = 10 : i32, message = "bqk,bkd->bqd"}> : () -> ()
    %cst_30 = arith.constant dense<0.000000e+00> : vector<2x8x8xf32>
    %114 = tpu.matmul %112, %113, %cst_30 {dimension_numbers = #tpu.dot_dimension_numbers<[2], [1], [1], [2], [0, 0, 0, 1, 1, 2], [0], [0]>} : vector<2x8x8xbf16>, vector<2x8x8xbf16>, vector<2x8x8xf32> -> vector<2x8x8xf32>
    "tpu.trace_stop"() : () -> ()
    %115 = vector.shape_cast %114 : vector<2x8x8xf32> to vector<16x8xf32>
    %c0_31 = arith.constant 0 : index
    %c24 = arith.constant 24 : index
    %116 = vector.load %arg21[%c0_31, %c24] : memref<16x32xf32, #tpu.memory_space<vmem>>, vector<16x8xf32>
    tpu.vector_store %arg21[%c0_31, %c24], %115 {strides = array<i32>} : memref<16x32xf32, #tpu.memory_space<vmem>>, vector<16x8xf32>,
    %c0_32 = arith.constant 0 : index
    %c0_33 = arith.constant 0 : index
    %117 = vector.load %arg21[%c0_32, %c0_33] : memref<16x32xf32, #tpu.memory_space<vmem>>, vector<16x32xf32>
    %118 = arith.truncf %117 : vector<16x32xf32> to vector<16x32xbf16>
    %c0_34 = arith.constant 0 : index
    %c0_35 = arith.constant 0 : index
    %c0_36 = arith.constant 0 : index
    %119 = vector.load %arg7[%c0_34, %c0_35, %c0_36] : memref<1x32x32xbf16, #tpu.memory_space<vmem>>, vector<1x32x32xbf16>
    %120 = vector.shape_cast %119 : vector<1x32x32xbf16> to vector<32x32xbf16>
    %cst_37 = arith.constant dense<0.000000e+00> : vector<16x32xf32>
    %121 = tpu.matmul %118, %120, %cst_37 {dimension_numbers = #tpu.dot_dimension_numbers<[1], [0], [0], [1], [0, 0, 1, 1], [], []>} : vector<16x32xbf16>, vector<32x32xbf16>, vector<16x32xf32> -> vector<16x32xf32>
    %c0_38 = arith.constant 0 : index
    %c0_39 = arith.constant 0 : index
    %c0_40 = arith.constant 0 : index
    %122 = vector.load %arg8[%c0_38, %c0_39, %c0_40] : memref<1x1x32xf32, #tpu.memory_space<vmem>>, vector<1x1x32xf32>
    %123 = vector.shape_cast %122 : vector<1x1x32xf32> to vector<1x32xf32>
    %124 = vector.broadcast %123 : vector<1x32xf32> to vector<16x32xf32>
    %125 = arith.addf %121, %124 : vector<16x32xf32>
    %126 = arith.addf %125, %3 : vector<16x32xf32>
    %c0_41 = arith.constant 0 : index
    %c0_42 = arith.constant 0 : index
    %c0_43 = arith.constant 0 : index
    %127 = vector.load %arg9[%c0_41, %c0_42, %c0_43] : memref<1x1x32xf32, #tpu.memory_space<vmem>>, vector<1x1x32xf32>
    %128 = vector.shape_cast %127 : vector<1x1x32xf32> to vector<1x32xf32>
    %c0_44 = arith.constant 0 : index
    %c0_45 = arith.constant 0 : index
    %c0_46 = arith.constant 0 : index
    %129 = vector.load %arg10[%c0_44, %c0_45, %c0_46] : memref<1x1x32xf32, #tpu.memory_space<vmem>>, vector<1x1x32xf32>
    %130 = vector.shape_cast %129 : vector<1x1x32xf32> to vector<1x32xf32>
    %cst_47 = arith.constant dense<0.000000e+00> : vector<16xf32>
    %131 = vector.multi_reduction <add>, %126, %cst_47 [1] : vector<16x32xf32> to vector<16xf32>
    %132 = vector.shape_cast %131 : vector<16xf32> to vector<16x1xf32>
    %cst_48 = arith.constant 3.200000e+01 : f32
    %133 = vector.broadcast %cst_48 : f32 to vector<16x1xf32>
    %134 = arith.divf %132, %133 : vector<16x1xf32>
    %135 = vector.broadcast %134 : vector<16x1xf32> to vector<16x32xf32>
    %136 = arith.subf %126, %135 : vector<16x32xf32>
    %137 = arith.mulf %136, %136 : vector<16x32xf32>
    %cst_49 = arith.constant dense<0.000000e+00> : vector<16xf32>
    %138 = vector.multi_reduction <add>, %137, %cst_49 [1] : vector<16x32xf32> to vector<16xf32>
    %139 = vector.shape_cast %138 : vector<16xf32> to vector<16x1xf32>
    %cst_50 = arith.constant 3.200000e+01 : f32
    %140 = vector.broadcast %cst_50 : f32 to vector<16x1xf32>
    %141 = arith.divf %139, %140 : vector<16x1xf32>
    %142 = vector.broadcast %134 : vector<16x1xf32> to vector<16x32xf32>
    %143 = arith.subf %126, %142 : vector<16x32xf32>
    %cst_51 = arith.constant 9.99999996E-13 : f32
    %144 = vector.broadcast %cst_51 : f32 to vector<16x1xf32>
    %145 = arith.addf %141, %144 : vector<16x1xf32>
    %146 = math.rsqrt %145 : vector<16x1xf32>
    %147 = vector.broadcast %146 : vector<16x1xf32> to vector<16x32xf32>
    %148 = arith.mulf %143, %147 : vector<16x32xf32>
    %149 = vector.broadcast %128 : vector<1x32xf32> to vector<16x32xf32>
    %150 = arith.mulf %148, %149 : vector<16x32xf32>
    %151 = vector.broadcast %130 : vector<1x32xf32> to vector<16x32xf32>
    %152 = arith.addf %150, %151 : vector<16x32xf32>
    %153 = arith.truncf %152 : vector<16x32xf32> to vector<16x32xbf16>
    %c0_52 = arith.constant 0 : index
    %c0_53 = arith.constant 0 : index
    %c0_54 = arith.constant 0 : index
    %154 = vector.load %arg11[%c0_52, %c0_53, %c0_54] : memref<1x32x64xbf16, #tpu.memory_space<vmem>>, vector<1x32x64xbf16>
    %155 = vector.shape_cast %154 : vector<1x32x64xbf16> to vector<32x64xbf16>
    %cst_55 = arith.constant dense<0.000000e+00> : vector<16x64xf32>
    %156 = tpu.matmul %153, %155, %cst_55 {dimension_numbers = #tpu.dot_dimension_numbers<[1], [0], [0], [1], [0, 0, 1, 1], [], []>} : vector<16x32xbf16>, vector<32x64xbf16>, vector<16x64xf32> -> vector<16x64xf32>
    %c0_56 = arith.constant 0 : index
    %c0_57 = arith.constant 0 : index
    %c0_58 = arith.constant 0 : index
    %157 = vector.load %arg12[%c0_56, %c0_57, %c0_58] : memref<1x1x64xf32, #tpu.memory_space<vmem>>, vector<1x1x64xf32>
    %158 = vector.shape_cast %157 : vector<1x1x64xf32> to vector<1x64xf32>
    %159 = vector.broadcast %158 : vector<1x64xf32> to vector<16x64xf32>
    %160 = arith.addf %156, %159 : vector<16x64xf32>
    %cst_59 = arith.constant 5.000000e-01 : f32
    %161 = vector.broadcast %cst_59 : f32 to vector<16x64xf32>
    %162 = arith.mulf %161, %160 : vector<16x64xf32>
    %cst_60 = arith.constant 0.707106769 : f32
    %163 = vector.broadcast %cst_60 : f32 to vector<16x64xf32>
    %164 = arith.mulf %160, %163 : vector<16x64xf32>
    %165 = math.erf %164 : vector<16x64xf32>
    %cst_61 = arith.constant 1.000000e+00 : f32
    %166 = vector.broadcast %cst_61 : f32 to vector<16x64xf32>
    %167 = arith.addf %166, %165 : vector<16x64xf32>
    %168 = arith.mulf %162, %167 : vector<16x64xf32>
    %169 = arith.truncf %168 : vector<16x64xf32> to vector<16x64xbf16>
    %c0_62 = arith.constant 0 : index
    %c0_63 = arith.constant 0 : index
    %c0_64 = arith.constant 0 : index
    %170 = vector.load %arg13[%c0_62, %c0_63, %c0_64] : memref<1x64x32xbf16, #tpu.memory_space<vmem>>, vector<1x64x32xbf16>
    %171 = vector.shape_cast %170 : vector<1x64x32xbf16> to vector<64x32xbf16>
    %cst_65 = arith.constant dense<0.000000e+00> : vector<16x32xf32>
    %172 = tpu.matmul %169, %171, %cst_65 {dimension_numbers = #tpu.dot_dimension_numbers<[1], [0], [0], [1], [0, 0, 1, 1], [], []>} : vector<16x64xbf16>, vector<64x32xbf16>, vector<16x32xf32> -> vector<16x32xf32>
    %c0_66 = arith.constant 0 : index
    %c0_67 = arith.constant 0 : index
    %c0_68 = arith.constant 0 : index
    %173 = vector.load %arg14[%c0_66, %c0_67, %c0_68] : memref<1x1x32xf32, #tpu.memory_space<vmem>>, vector<1x1x32xf32>
    %174 = vector.shape_cast %173 : vector<1x1x32xf32> to vector<1x32xf32>
    %175 = vector.broadcast %174 : vector<1x32xf32> to vector<16x32xf32>
    %176 = arith.addf %172, %175 : vector<16x32xf32>
    %177 = arith.addf %176, %152 : vector<16x32xf32>
    %c0_69 = arith.constant 0 : index
    %c0_70 = arith.constant 0 : index
    %c0_71 = arith.constant 0 : index
    %178 = vector.load %arg15[%c0_69, %c0_70, %c0_71] : memref<1x1x32xf32, #tpu.memory_space<vmem>>, vector<1x1x32xf32>
    %179 = vector.shape_cast %178 : vector<1x1x32xf32> to vector<1x32xf32>
    %c0_72 = arith.constant 0 : index
    %c0_73 = arith.constant 0 : index
    %c0_74 = arith.constant 0 : index
    %180 = vector.load %arg16[%c0_72, %c0_73, %c0_74] : memref<1x1x32xf32, #tpu.memory_space<vmem>>, vector<1x1x32xf32>
    %181 = vector.shape_cast %180 : vector<1x1x32xf32> to vector<1x32xf32>
    %cst_75 = arith.constant dense<0.000000e+00> : vector<16xf32>
    %182 = vector.multi_reduction <add>, %177, %cst_75 [1] : vector<16x32xf32> to vector<16xf32>
    %183 = vector.shape_cast %182 : vector<16xf32> to vector<16x1xf32>
    %cst_76 = arith.constant 3.200000e+01 : f32
    %184 = vector.broadcast %cst_76 : f32 to vector<16x1xf32>
    %185 = arith.divf %183, %184 : vector<16x1xf32>
    %186 = vector.broadcast %185 : vector<16x1xf32> to vector<16x32xf32>
    %187 = arith.subf %177, %186 : vector<16x32xf32>
    %188 = arith.mulf %187, %187 : vector<16x32xf32>
    %cst_77 = arith.constant dense<0.000000e+00> : vector<16xf32>
    %189 = vector.multi_reduction <add>, %188, %cst_77 [1] : vector<16x32xf32> to vector<16xf32>
    %190 = vector.shape_cast %189 : vector<16xf32> to vector<16x1xf32>
    %cst_78 = arith.constant 3.200000e+01 : f32
    %191 = vector.broadcast %cst_78 : f32 to vector<16x1xf32>
    %192 = arith.divf %190, %191 : vector<16x1xf32>
    %193 = vector.broadcast %185 : vector<16x1xf32> to vector<16x32xf32>
    %194 = arith.subf %177, %193 : vector<16x32xf32>
    %cst_79 = arith.constant 9.99999996E-13 : f32
    %195 = vector.broadcast %cst_79 : f32 to vector<16x1xf32>
    %196 = arith.addf %192, %195 : vector<16x1xf32>
    %197 = math.rsqrt %196 : vector<16x1xf32>
    %198 = vector.broadcast %197 : vector<16x1xf32> to vector<16x32xf32>
    %199 = arith.mulf %194, %198 : vector<16x32xf32>
    %200 = vector.broadcast %179 : vector<1x32xf32> to vector<16x32xf32>
    %201 = arith.mulf %199, %200 : vector<16x32xf32>
    %202 = vector.broadcast %181 : vector<1x32xf32> to vector<16x32xf32>
    %203 = arith.addf %201, %202 : vector<16x32xf32>
    %c0_80 = arith.constant 0 : index
    %c0_81 = arith.constant 0 : index
    %204 = vector.load %arg20[%c0_80, %c0_81] : memref<16x32xf32, #tpu.memory_space<vmem>>, vector<16x32xf32>
    tpu.vector_store %arg20[%c0_80, %c0_81], %203 {strides = array<i32>} : memref<16x32xf32, #tpu.memory_space<vmem>>, vector<16x32xf32>,
    %c1_i32 = arith.constant 1 : i32
    %205 = arith.cmpi eq, %arg0, %c1_i32 : i32
    %206 = arith.extui %205 : i1 to i32
    %c0_i32_82 = arith.constant 0 : i32
    %207 = arith.cmpi ne, %206, %c0_i32_82 : i32
    scf.if %207 {
      %c0_83 = arith.constant 0 : index
      %c0_84 = arith.constant 0 : index
      %208 = tpu.strided_load %arg20[%c0_83, %c0_84] {strides = array<i32: 8, 1>} : memref<16x32xf32, #tpu.memory_space<vmem>>, vector<2x32xf32>
      %209 = arith.truncf %208 : vector<2x32xf32> to vector<2x32xbf16>
      %c0_85 = arith.constant 0 : index
      %c0_86 = arith.constant 0 : index
      %210 = vector.load %arg17[%c0_85, %c0_86] : memref<32x32xbf16, #tpu.memory_space<vmem>>, vector<32x32xbf16>
      %cst_87 = arith.constant dense<0.000000e+00> : vector<2x32xf32>
      %211 = tpu.matmul %209, %210, %cst_87 {dimension_numbers = #tpu.dot_dimension_numbers<[1], [0], [0], [1], [0, 0, 1, 1], [], []>} : vector<2x32xbf16>, vector<32x32xbf16>, vector<2x32xf32> -> vector<2x32xf32>
      %c0_88 = arith.constant 0 : index
      %c0_89 = arith.constant 0 : index
      %212 = vector.load %arg18[%c0_88, %c0_89] : memref<1x32xf32, #tpu.memory_space<vmem>>, vector<1x32xf32>
      %213 = vector.broadcast %212 : vector<1x32xf32> to vector<2x32xf32>
      %214 = arith.addf %211, %213 : vector<2x32xf32>
      %215 = math.tanh %214 : vector<2x32xf32>
      %c0_90 = arith.constant 0 : index
      %c0_91 = arith.constant 0 : index
      %216 = vector.load %arg19[%c0_90, %c0_91] : memref<2x32xf32, #tpu.memory_space<vmem>>, vector<2x32xf32>
      tpu.vector_store %arg19[%c0_90, %c0_91], %215 {strides = array<i32>} : memref<2x32xf32, #tpu.memory_space<vmem>>, vector<2x32xf32>,
    } else {
    }
    return
  }
  func.func @transform_0(%arg0: i32) -> (i32, i32) {
    %c0_i32 = arith.constant 0 : i32
    %c0_i32_0 = arith.constant 0 : i32
    %c0_i32_1 = arith.constant 0 : i32
    return %c0_i32, %c0_i32_0 : i32, i32
  }
  func.func @transform_1(%arg0: i32) -> (i32, i32, i32) {
    %c0_i32 = arith.constant 0 : i32
    %c0_i32_0 = arith.constant 0 : i32
    %c0_i32_1 = arith.constant 0 : i32
    %c0_i32_2 = arith.constant 0 : i32
    return %c0_i32, %c0_i32_0, %c0_i32_1 : i32, i32, i32
  }
  func.func @transform_2(%arg0: i32) -> (i32, i32) {
    %c0_i32 = arith.constant 0 : i32
    %c0_i32_0 = arith.constant 0 : i32
    %c0_i32_1 = arith.constant 0 : i32
    return %c0_i32, %c0_i32_0 : i32, i32
  }
  func.func @transform_3(%arg0: i32) -> (i32, i32) {
    %c0_i32 = arith.constant 0 : i32
    %c0_i32_0 = arith.constant 0 : i32
    %c0_i32_1 = arith.constant 0 : i32
    return %c0_i32, %c0_i32_0 : i32, i32
  }
  func.func @transform_4(%arg0: i32) -> (i32, i32, i32) {
    %c0_i32 = arith.constant 0 : i32
    %c0_i32_0 = arith.constant 0 : i32
    %c0_i32_1 = arith.constant 0 : i32
    return %arg0, %c0_i32, %c0_i32_0 : i32, i32, i32
  }
  func.func @transform_5(%arg0: i32) -> (i32, i32, i32) {
    %c0_i32 = arith.constant 0 : i32
    %c0_i32_0 = arith.constant 0 : i32
    %c0_i32_1 = arith.constant 0 : i32
    return %arg0, %c0_i32, %c0_i32_0 : i32, i32, i32
  }
  func.func @transform_6(%arg0: i32) -> (i32, i32, i32) {
    %c0_i32 = arith.constant 0 : i32
    %c0_i32_0 = arith.constant 0 : i32
    %c0_i32_1 = arith.constant 0 : i32
    return %arg0, %c0_i32, %c0_i32_0 : i32, i32, i32
  }
  func.func @transform_7(%arg0: i32) -> (i32, i32, i32) {
    %c0_i32 = arith.constant 0 : i32
    %c0_i32_0 = arith.constant 0 : i32
    %c0_i32_1 = arith.constant 0 : i32
    return %arg0, %c0_i32, %c0_i32_0 : i32, i32, i32
  }
  func.func @transform_8(%arg0: i32) -> (i32, i32, i32) {
    %c0_i32 = arith.constant 0 : i32
    %c0_i32_0 = arith.constant 0 : i32
    %c0_i32_1 = arith.constant 0 : i32
    return %arg0, %c0_i32, %c0_i32_0 : i32, i32, i32
  }
  func.func @transform_9(%arg0: i32) -> (i32, i32, i32) {
    %c0_i32 = arith.constant 0 : i32
    %c0_i32_0 = arith.constant 0 : i32
    %c0_i32_1 = arith.constant 0 : i32
    return %arg0, %c0_i32, %c0_i32_0 : i32, i32, i32
  }
  func.func @transform_10(%arg0: i32) -> (i32, i32, i32) {
    %c0_i32 = arith.constant 0 : i32
    %c0_i32_0 = arith.constant 0 : i32
    %c0_i32_1 = arith.constant 0 : i32
    return %arg0, %c0_i32, %c0_i32_0 : i32, i32, i32
  }
  func.func @transform_11(%arg0: i32) -> (i32, i32, i32) {
    %c0_i32 = arith.constant 0 : i32
    %c0_i32_0 = arith.constant 0 : i32
    %c0_i32_1 = arith.constant 0 : i32
    return %arg0, %c0_i32, %c0_i32_0 : i32, i32, i32
  }
  func.func @transform_12(%arg0: i32) -> (i32, i32, i32) {
    %c0_i32 = arith.constant 0 : i32
    %c0_i32_0 = arith.constant 0 : i32
    %c0_i32_1 = arith.constant 0 : i32
    return %arg0, %c0_i32, %c0_i32_0 : i32, i32, i32
  }
  func.func @transform_13(%arg0: i32) -> (i32, i32, i32) {
    %c0_i32 = arith.constant 0 : i32
    %c0_i32_0 = arith.constant 0 : i32
    %c0_i32_1 = arith.constant 0 : i32
    return %arg0, %c0_i32, %c0_i32_0 : i32, i32, i32
  }
  func.func @transform_14(%arg0: i32) -> (i32, i32, i32) {
    %c0_i32 = arith.constant 0 : i32
    %c0_i32_0 = arith.constant 0 : i32
    %c0_i32_1 = arith.constant 0 : i32
    return %arg0, %c0_i32, %c0_i32_0 : i32, i32, i32
  }
  func.func @transform_15(%arg0: i32) -> (i32, i32, i32) {
    %c0_i32 = arith.constant 0 : i32
    %c0_i32_0 = arith.constant 0 : i32
    %c0_i32_1 = arith.constant 0 : i32
    return %arg0, %c0_i32, %c0_i32_0 : i32, i32, i32
  }
  func.func @transform_16(%arg0: i32) -> (i32, i32) {
    %c0_i32 = arith.constant 0 : i32
    %c0_i32_0 = arith.constant 0 : i32
    %c0_i32_1 = arith.constant 0 : i32
    return %c0_i32, %c0_i32_0 : i32, i32
  }
  func.func @transform_17(%arg0: i32) -> (i32, i32) {
    %c0_i32 = arith.constant 0 : i32
    %c0_i32_0 = arith.constant 0 : i32
    %c0_i32_1 = arith.constant 0 : i32
    return %c0_i32, %c0_i32_0 : i32, i32
  }
  func.func @transform_18(%arg0: i32) -> (i32, i32) {
    %c0_i32 = arith.constant 0 : i32
    %c0_i32_0 = arith.constant 0 : i32
    %c0_i32_1 = arith.constant 0 : i32
    return %c0_i32, %c0_i32_0 : i32, i32
  }
}

</mosaic_0001>

<llo_original>
// kernel: bert_encoder_forward.1
$region0: #{bert_encoder_forward.1}
  #allocation0 [shape = 'u32[]', space=smem, size = 0x4, offset = 0x4, fixed_abs, tag = 'smem constant byte address 0x4 - core index']
  #allocation1 [shape = 'u32[144,128]{1,0:T(1,128)}', space=vmem, size = 0x12000, scoped, tag = 'internal scratch']
  #allocation2 [shape = 'f32[16,32]{1,0:T(8,128)}', space=vmem, size = 0x2000, scoped, tag = 'scratch operand']
  #allocation3 [shape = 'f32[16,32]{1,0:T(8,128)}', space=vmem, size = 0x2000, scoped, tag = 'scratch operand']
  %s0 = inlined_call_operand.vmem [shape: f32[16,32], index: 0, kind: input, shape index: {}]
  %s1 = inlined_call_operand.vmem [shape: f32[2,1,8], index: 1, kind: input, shape index: {}]
  %s2 = inlined_call_operand.vmem [shape: f32[1,32], index: 2, kind: input, shape index: {}]
  %s3 = inlined_call_operand.vmem [shape: f32[1,32], index: 3, kind: input, shape index: {}]
  %s4 = inlined_call_operand.vmem [shape: bf16[2,32,96], index: 4, kind: input, shape index: {}]
  %s5 = inlined_call_operand.vmem [shape: f32[2,1,96], index: 5, kind: input, shape index: {}]
  %s6 = inlined_call_operand.vmem [shape: bf16[2,32,32], index: 6, kind: input, shape index: {}]
  %s7 = inlined_call_operand.vmem [shape: f32[2,1,32], index: 7, kind: input, shape index: {}]
  %s8 = inlined_call_operand.vmem [shape: f32[2,1,32], index: 8, kind: input, shape index: {}]
  %s9 = inlined_call_operand.vmem [shape: f32[2,1,32], index: 9, kind: input, shape index: {}]
  %s10 = inlined_call_operand.vmem [shape: bf16[2,32,64], index: 10, kind: input, shape index: {}]
  %s11 = inlined_call_operand.vmem [shape: f32[2,1,64], index: 11, kind: input, shape index: {}]
  %s12 = inlined_call_operand.vmem [shape: bf16[2,64,32], index: 12, kind: input, shape index: {}]
  %s13 = inlined_call_operand.vmem [shape: f32[2,1,32], index: 13, kind: input, shape index: {}]
  %s14 = inlined_call_operand.vmem [shape: f32[2,1,32], index: 14, kind: input, shape index: {}]
  %s15 = inlined_call_operand.vmem [shape: f32[2,1,32], index: 15, kind: input, shape index: {}]
  %s16 = inlined_call_operand.vmem [shape: bf16[32,32], index: 16, kind: input, shape index: {}]
  %s17 = inlined_call_operand.vmem [shape: f32[1,32], index: 17, kind: input, shape index: {}]
  %s18 = inlined_call_operand.hbm [shape: f32[2,32], index: 18, kind: output, shape index: {}]
  %s19 = sld [smem:[#allocation0]]
  $region113: #{bert_encoder_forward.1} parent=0
    _
  %s21 = ssub.s32 1, %s19
  %s22 = scalar_select 0, %s21, %s19
  $region1: #{bert_encoder_forward.1} parent=0
    #allocation4 [shape = 'u8[1024]{0}', space=vmem, size = 0x400, scoped, tag = 'output window, operand 0, single buffered']
    #allocation5 [shape = 's32[2]{0}', space=sflag, size = 0x8, scoped, tag = 'scoped memory for bert_encoder_forward.1']
    %23 = vsyncpa [#allocation5], 0
    loop: start=0, step=1, limit=4
    $region2: #{bert_encoder_forward.1} parent=1 // loop_pre_header
      _
    $region3: #{bert_encoder_forward.1} parent=1 // loop_header
      %s25 = sphi 0, %s29
      %p26 = scmp.ge.s32.totalorder %s25, 4
      %s33 = sphi 0, %s33
      %s35 = sphi 0, %s33
      %s36 = sphi 0, %s35
      %s50 = sphi 0, %s36
      %s54 = sphi 0, %s54
      %s56 = sphi 0, %s54
      %s57 = sphi 0, %s56
      %s71 = sphi 0, %s57
      %s75 = sphi 0, %s75
      %s77 = sphi 0, %s75
      %s78 = sphi 0, %s77
      %s92 = sphi 0, %s78
      %s96 = sphi 0, %s96
      %s98 = sphi 0, %s96
      %s99 = sphi 0, %s98
      %s113 = sphi 0, %s99
      %s119 = sphi 0, %s121
      %s122 = sphi 0, %s119
      %s123 = sphi 0, %s122
      %s139 = sphi 0, %s123
      %s145 = sphi 0, %s147
      %s148 = sphi 0, %s145
      %s149 = sphi 0, %s148
      %s165 = sphi 0, %s149
      %s171 = sphi 0, %s173
      %s174 = sphi 0, %s171
      %s175 = sphi 0, %s174
      %s191 = sphi 0, %s175
      %s197 = sphi 0, %s199
      %s200 = sphi 0, %s197
      %s201 = sphi 0, %s200
      %s217 = sphi 0, %s201
      %s223 = sphi 0, %s225
      %s226 = sphi 0, %s223
      %s227 = sphi 0, %s226
      %s243 = sphi 0, %s227
      %s249 = sphi 0, %s251
      %s252 = sphi 0, %s249
      %s253 = sphi 0, %s252
      %s269 = sphi 0, %s253
      %s275 = sphi 0, %s277
      %s278 = sphi 0, %s275
      %s279 = sphi 0, %s278
      %s295 = sphi 0, %s279
      %s301 = sphi 0, %s303
      %s304 = sphi 0, %s301
      %s305 = sphi 0, %s304
      %s321 = sphi 0, %s305
      %s327 = sphi 0, %s329
      %s330 = sphi 0, %s327
      %s331 = sphi 0, %s330
      %s347 = sphi 0, %s331
      %s353 = sphi 0, %s355
      %s356 = sphi 0, %s353
      %s357 = sphi 0, %s356
      %s373 = sphi 0, %s357
      %s379 = sphi 0, %s381
      %s382 = sphi 0, %s379
      %s383 = sphi 0, %s382
      %s399 = sphi 0, %s383
      %s405 = sphi 0, %s407
      %s408 = sphi 0, %s405
      %s409 = sphi 0, %s408
      %s425 = sphi 0, %s409
      %s429 = sphi 0, %s429
      %s431 = sphi 0, %s429
      %s432 = sphi 0, %s431
      %s446 = sphi 0, %s432
      %s450 = sphi 0, %s450
      %s452 = sphi 0, %s450
      %s453 = sphi 0, %s452
      %s467 = sphi 0, %s453
      %s471 = sphi 0, %s471
      %s473 = sphi 0, %s471
      %s474 = sphi 0, %s473
      %s488 = sphi 0, %s474
    $region4: #{bert_encoder_forward.1} parent=1 // loop_header_branch
      %28 = sbr.rel (%p26) target = $region8
    $region5: #{bert_encoder_forward.1} parent=1 // loop_body
      %s30 = ssub.s32 %s25, 1
      %s31 = ssub.s32 %s25, 2
      %s32 = sadd.s32 %s25, 1
      %s34 = sadd.s32 %s33, 1
      %p37 = scmp.eq.s32.totalorder %s25, 1
      %p38 = scmp.ne.s32.totalorder %s33, %s35
      %p39 = scmp.eq.s32.totalorder %s25, 0
      %p40 = por %p38, %p39
      %p41 = scmp.ne.s32.totalorder %s33, %s35
      %p42 = scmp.eq.s32.totalorder %s30, 1
      %p43 = por %p41, %p42
      %p44 = scmp.ne.s32.totalorder %s35, %s36
      %p45 = scmp.eq.s32.totalorder %s30, 0
      %p46 = por %p44, %p45
      %p47 = scmp.ne.s32.totalorder %s35, %s36
      %p48 = scmp.eq.s32.totalorder %s31, 1
      %p49 = por %p47, %p48
      %p51 = scmp.ne.s32.totalorder %s36, %s50
      %p52 = scmp.eq.s32.totalorder %s31, 0
      %p53 = por %p51, %p52
      %s55 = sadd.s32 %s54, 1
      %p58 = scmp.eq.s32.totalorder %s25, 1
      %p59 = scmp.ne.s32.totalorder %s54, %s56
      %p60 = scmp.eq.s32.totalorder %s25, 0
      %p61 = por %p59, %p60
      %p62 = scmp.ne.s32.totalorder %s54, %s56
      %p63 = scmp.eq.s32.totalorder %s30, 1
      %p64 = por %p62, %p63
      %p65 = scmp.ne.s32.totalorder %s56, %s57
      %p66 = scmp.eq.s32.totalorder %s30, 0
      %p67 = por %p65, %p66
      %p68 = scmp.ne.s32.totalorder %s56, %s57
      %p69 = scmp.eq.s32.totalorder %s31, 1
      %p70 = por %p68, %p69
      %p72 = scmp.ne.s32.totalorder %s57, %s71
      %p73 = scmp.eq.s32.totalorder %s31, 0
      %p74 = por %p72, %p73
      %s76 = sadd.s32 %s75, 1
      %p79 = scmp.eq.s32.totalorder %s25, 1
      %p80 = scmp.ne.s32.totalorder %s75, %s77
      %p81 = scmp.eq.s32.totalorder %s25, 0
      %p82 = por %p80, %p81
      %p83 = scmp.ne.s32.totalorder %s75, %s77
      %p84 = scmp.eq.s32.totalorder %s30, 1
      %p85 = por %p83, %p84
      %p86 = scmp.ne.s32.totalorder %s77, %s78
      %p87 = scmp.eq.s32.totalorder %s30, 0
      %p88 = por %p86, %p87
      %p89 = scmp.ne.s32.totalorder %s77, %s78
      %p90 = scmp.eq.s32.totalorder %s31, 1
      %p91 = por %p89, %p90
      %p93 = scmp.ne.s32.totalorder %s78, %s92
      %p94 = scmp.eq.s32.totalorder %s31, 0
      %p95 = por %p93, %p94
      %s97 = sadd.s32 %s96, 1
      %p100 = scmp.eq.s32.totalorder %s25, 1
      %p101 = scmp.ne.s32.totalorder %s96, %s98
      %p102 = scmp.eq.s32.totalorder %s25, 0
      %p103 = por %p101, %p102
      %p104 = scmp.ne.s32.totalorder %s96, %s98
      %p105 = scmp.eq.s32.totalorder %s30, 1
      %p106 = por %p104, %p105
      %p107 = scmp.ne.s32.totalorder %s98, %s99
      %p108 = scmp.eq.s32.totalorder %s30, 0
      %p109 = por %p107, %p108
      %p110 = scmp.ne.s32.totalorder %s98, %s99
      %p111 = scmp.eq.s32.totalorder %s31, 1
      %p112 = por %p110, %p111
      %p114 = scmp.ne.s32.totalorder %s99, %s113
      %p115 = scmp.eq.s32.totalorder %s31, 0
      %p116 = por %p114, %p115
      %s117 = ssub.s32 %s25, %s32
      %p118 = scmp.eq.s32.totalorder %s117, 0
      %s120 = sadd.s32 %s119, 1
      %s121 = scalar_select %p118, %s119, %s120
      %p124 = pneg %p118
      %p125 = scmp.eq.s32.totalorder %s25, 1
      %p126 = por %p124, %p125
      %p127 = scmp.ne.s32.totalorder %s119, %s122
      %p128 = scmp.eq.s32.totalorder %s25, 0
      %p129 = por %p127, %p128
      %p130 = scmp.ne.s32.totalorder %s119, %s122
      %p131 = scmp.eq.s32.totalorder %s30, 1
      %p132 = por %p130, %p131
      %p133 = scmp.ne.s32.totalorder %s122, %s123
      %p134 = scmp.eq.s32.totalorder %s30, 0
      %p135 = por %p133, %p134
      %p136 = scmp.ne.s32.totalorder %s122, %s123
      %p137 = scmp.eq.s32.totalorder %s31, 1
      %p138 = por %p136, %p137
      %p140 = scmp.ne.s32.totalorder %s123, %s139
      %p141 = scmp.eq.s32.totalorder %s31, 0
      %p142 = por %p140, %p141
      %s143 = ssub.s32 %s25, %s32
      %p144 = scmp.eq.s32.totalorder %s143, 0
      %s146 = sadd.s32 %s145, 1
      %s147 = scalar_select %p144, %s145, %s146
      %p150 = pneg %p144
      %p151 = scmp.eq.s32.totalorder %s25, 1
      %p152 = por %p150, %p151
      %p153 = scmp.ne.s32.totalorder %s145, %s148
      %p154 = scmp.eq.s32.totalorder %s25, 0
      %p155 = por %p153, %p154
      %p156 = scmp.ne.s32.totalorder %s145, %s148
      %p157 = scmp.eq.s32.totalorder %s30, 1
      %p158 = por %p156, %p157
      %p159 = scmp.ne.s32.totalorder %s148, %s149
      %p160 = scmp.eq.s32.totalorder %s30, 0
      %p161 = por %p159, %p160
      %p162 = scmp.ne.s32.totalorder %s148, %s149
      %p163 = scmp.eq.s32.totalorder %s31, 1
      %p164 = por %p162, %p163
      %p166 = scmp.ne.s32.totalorder %s149, %s165
      %p167 = scmp.eq.s32.totalorder %s31, 0
      %p168 = por %p166, %p167
      %s169 = ssub.s32 %s25, %s32
      %p170 = scmp.eq.s32.totalorder %s169, 0
      %s172 = sadd.s32 %s171, 1
      %s173 = scalar_select %p170, %s171, %s172
      %p176 = pneg %p170
      %p177 = scmp.eq.s32.totalorder %s25, 1
      %p178 = por %p176, %p177
      %p179 = scmp.ne.s32.totalorder %s171, %s174
      %p180 = scmp.eq.s32.totalorder %s25, 0
      %p181 = por %p179, %p180
      %p182 = scmp.ne.s32.totalorder %s171, %s174
      %p183 = scmp.eq.s32.totalorder %s30, 1
      %p184 = por %p182, %p183
      %p185 = scmp.ne.s32.totalorder %s174, %s175
      %p186 = scmp.eq.s32.totalorder %s30, 0
      %p187 = por %p185, %p186
      %p188 = scmp.ne.s32.totalorder %s174, %s175
      %p189 = scmp.eq.s32.totalorder %s31, 1
      %p190 = por %p188, %p189
      %p192 = scmp.ne.s32.totalorder %s175, %s191
      %p193 = scmp.eq.s32.totalorder %s31, 0
      %p194 = por %p192, %p193
      %s195 = ssub.s32 %s25, %s32
      %p196 = scmp.eq.s32.totalorder %s195, 0
      %s198 = sadd.s32 %s197, 1
      %s199 = scalar_select %p196, %s197, %s198
      %p202 = pneg %p196
      %p203 = scmp.eq.s32.totalorder %s25, 1
      %p204 = por %p202, %p203
      %p205 = scmp.ne.s32.totalorder %s197, %s200
      %p206 = scmp.eq.s32.totalorder %s25, 0
      %p207 = por %p205, %p206
      %p208 = scmp.ne.s32.totalorder %s197, %s200
      %p209 = scmp.eq.s32.totalorder %s30, 1
      %p210 = por %p208, %p209
      %p211 = scmp.ne.s32.totalorder %s200, %s201
      %p212 = scmp.eq.s32.totalorder %s30, 0
      %p213 = por %p211, %p212
      %p214 = scmp.ne.s32.totalorder %s200, %s201
      %p215 = scmp.eq.s32.totalorder %s31, 1
      %p216 = por %p214, %p215
      %p218 = scmp.ne.s32.totalorder %s201, %s217
      %p219 = scmp.eq.s32.totalorder %s31, 0
      %p220 = por %p218, %p219
      %s221 = ssub.s32 %s25, %s32
      %p222 = scmp.eq.s32.totalorder %s221, 0
      %s224 = sadd.s32 %s223, 1
      %s225 = scalar_select %p222, %s223, %s224
      %p228 = pneg %p222
      %p229 = scmp.eq.s32.totalorder %s25, 1
      %p230 = por %p228, %p229
      %p231 = scmp.ne.s32.totalorder %s223, %s226
      %p232 = scmp.eq.s32.totalorder %s25, 0
      %p233 = por %p231, %p232
      %p234 = scmp.ne.s32.totalorder %s223, %s226
      %p235 = scmp.eq.s32.totalorder %s30, 1
      %p236 = por %p234, %p235
      %p237 = scmp.ne.s32.totalorder %s226, %s227
      %p238 = scmp.eq.s32.totalorder %s30, 0
      %p239 = por %p237, %p238
      %p240 = scmp.ne.s32.totalorder %s226, %s227
      %p241 = scmp.eq.s32.totalorder %s31, 1
      %p242 = por %p240, %p241
      %p244 = scmp.ne.s32.totalorder %s227, %s243
      %p245 = scmp.eq.s32.totalorder %s31, 0
      %p246 = por %p244, %p245
      %s247 = ssub.s32 %s25, %s32
      %p248 = scmp.eq.s32.totalorder %s247, 0
      %s250 = sadd.s32 %s249, 1
      %s251 = scalar_select %p248, %s249, %s250
      %p254 = pneg %p248
      %p255 = scmp.eq.s32.totalorder %s25, 1
      %p256 = por %p254, %p255
      %p257 = scmp.ne.s32.totalorder %s249, %s252
      %p258 = scmp.eq.s32.totalorder %s25, 0
      %p259 = por %p257, %p258
      %p260 = scmp.ne.s32.totalorder %s249, %s252
      %p261 = scmp.eq.s32.totalorder %s30, 1
      %p262 = por %p260, %p261
      %p263 = scmp.ne.s32.totalorder %s252, %s253
      %p264 = scmp.eq.s32.totalorder %s30, 0
      %p265 = por %p263, %p264
      %p266 = scmp.ne.s32.totalorder %s252, %s253
      %p267 = scmp.eq.s32.totalorder %s31, 1
      %p268 = por %p266, %p267
      %p270 = scmp.ne.s32.totalorder %s253, %s269
      %p271 = scmp.eq.s32.totalorder %s31, 0
      %p272 = por %p270, %p271
      %s273 = ssub.s32 %s25, %s32
      %p274 = scmp.eq.s32.totalorder %s273, 0
      %s276 = sadd.s32 %s275, 1
      %s277 = scalar_select %p274, %s275, %s276
      %p280 = pneg %p274
      %p281 = scmp.eq.s32.totalorder %s25, 1
      %p282 = por %p280, %p281
      %p283 = scmp.ne.s32.totalorder %s275, %s278
      %p284 = scmp.eq.s32.totalorder %s25, 0
      %p285 = por %p283, %p284
      %p286 = scmp.ne.s32.totalorder %s275, %s278
      %p287 = scmp.eq.s32.totalorder %s30, 1
      %p288 = por %p286, %p287
      %p289 = scmp.ne.s32.totalorder %s278, %s279
      %p290 = scmp.eq.s32.totalorder %s30, 0
      %p291 = por %p289, %p290
      %p292 = scmp.ne.s32.totalorder %s278, %s279
      %p293 = scmp.eq.s32.totalorder %s31, 1
      %p294 = por %p292, %p293
      %p296 = scmp.ne.s32.totalorder %s279, %s295
      %p297 = scmp.eq.s32.totalorder %s31, 0
      %p298 = por %p296, %p297
      %s299 = ssub.s32 %s25, %s32
      %p300 = scmp.eq.s32.totalorder %s299, 0
      %s302 = sadd.s32 %s301, 1
      %s303 = scalar_select %p300, %s301, %s302
      %p306 = pneg %p300
      %p307 = scmp.eq.s32.totalorder %s25, 1
      %p308 = por %p306, %p307
      %p309 = scmp.ne.s32.totalorder %s301, %s304
      %p310 = scmp.eq.s32.totalorder %s25, 0
      %p311 = por %p309, %p310
      %p312 = scmp.ne.s32.totalorder %s301, %s304
      %p313 = scmp.eq.s32.totalorder %s30, 1
      %p314 = por %p312, %p313
      %p315 = scmp.ne.s32.totalorder %s304, %s305
      %p316 = scmp.eq.s32.totalorder %s30, 0
      %p317 = por %p315, %p316
      %p318 = scmp.ne.s32.totalorder %s304, %s305
      %p319 = scmp.eq.s32.totalorder %s31, 1
      %p320 = por %p318, %p319
      %p322 = scmp.ne.s32.totalorder %s305, %s321
      %p323 = scmp.eq.s32.totalorder %s31, 0
      %p324 = por %p322, %p323
      %s325 = ssub.s32 %s25, %s32
      %p326 = scmp.eq.s32.totalorder %s325, 0
      %s328 = sadd.s32 %s327, 1
      %s329 = scalar_select %p326, %s327, %s328
      %p332 = pneg %p326
      %p333 = scmp.eq.s32.totalorder %s25, 1
      %p334 = por %p332, %p333
      %p335 = scmp.ne.s32.totalorder %s327, %s330
      %p336 = scmp.eq.s32.totalorder %s25, 0
      %p337 = por %p335, %p336
      %p338 = scmp.ne.s32.totalorder %s327, %s330
      %p339 = scmp.eq.s32.totalorder %s30, 1
      %p340 = por %p338, %p339
      %p341 = scmp.ne.s32.totalorder %s330, %s331
      %p342 = scmp.eq.s32.totalorder %s30, 0
      %p343 = por %p341, %p342
      %p344 = scmp.ne.s32.totalorder %s330, %s331
      %p345 = scmp.eq.s32.totalorder %s31, 1
      %p346 = por %p344, %p345
      %p348 = scmp.ne.s32.totalorder %s331, %s347
      %p349 = scmp.eq.s32.totalorder %s31, 0
      %p350 = por %p348, %p349
      %s351 = ssub.s32 %s25, %s32
      %p352 = scmp.eq.s32.totalorder %s351, 0
      %s354 = sadd.s32 %s353, 1
      %s355 = scalar_select %p352, %s353, %s354
      %p358 = pneg %p352
      %p359 = scmp.eq.s32.totalorder %s25, 1
      %p360 = por %p358, %p359
      %p361 = scmp.ne.s32.totalorder %s353, %s356
      %p362 = scmp.eq.s32.totalorder %s25, 0
      %p363 = por %p361, %p362
      %p364 = scmp.ne.s32.totalorder %s353, %s356
      %p365 = scmp.eq.s32.totalorder %s30, 1
      %p366 = por %p364, %p365
      %p367 = scmp.ne.s32.totalorder %s356, %s357
      %p368 = scmp.eq.s32.totalorder %s30, 0
      %p369 = por %p367, %p368
      %p370 = scmp.ne.s32.totalorder %s356, %s357
      %p371 = scmp.eq.s32.totalorder %s31, 1
      %p372 = por %p370, %p371
      %p374 = scmp.ne.s32.totalorder %s357, %s373
      %p375 = scmp.eq.s32.totalorder %s31, 0
      %p376 = por %p374, %p375
      %s377 = ssub.s32 %s25, %s32
      %p378 = scmp.eq.s32.totalorder %s377, 0
      %s380 = sadd.s32 %s379, 1
      %s381 = scalar_select %p378, %s379, %s380
      %p384 = pneg %p378
      %p385 = scmp.eq.s32.totalorder %s25, 1
      %p386 = por %p384, %p385
      %p387 = scmp.ne.s32.totalorder %s379, %s382
      %p388 = scmp.eq.s32.totalorder %s25, 0
      %p389 = por %p387, %p388
      %p390 = scmp.ne.s32.totalorder %s379, %s382
      %p391 = scmp.eq.s32.totalorder %s30, 1
      %p392 = por %p390, %p391
      %p393 = scmp.ne.s32.totalorder %s382, %s383
      %p394 = scmp.eq.s32.totalorder %s30, 0
      %p395 = por %p393, %p394
      %p396 = scmp.ne.s32.totalorder %s382, %s383
      %p397 = scmp.eq.s32.totalorder %s31, 1
      %p398 = por %p396, %p397
      %p400 = scmp.ne.s32.totalorder %s383, %s399
      %p401 = scmp.eq.s32.totalorder %s31, 0
      %p402 = por %p400, %p401
      %s403 = ssub.s32 %s25, %s32
      %p404 = scmp.eq.s32.totalorder %s403, 0
      %s406 = sadd.s32 %s405, 1
      %s407 = scalar_select %p404, %s405, %s406
      %p410 = pneg %p404
      %p411 = scmp.eq.s32.totalorder %s25, 1
      %p412 = por %p410, %p411
      %p413 = scmp.ne.s32.totalorder %s405, %s408
      %p414 = scmp.eq.s32.totalorder %s25, 0
      %p415 = por %p413, %p414
      %p416 = scmp.ne.s32.totalorder %s405, %s408
      %p417 = scmp.eq.s32.totalorder %s30, 1
      %p418 = por %p416, %p417
      %p419 = scmp.ne.s32.totalorder %s408, %s409
      %p420 = scmp.eq.s32.totalorder %s30, 0
      %p421 = por %p419, %p420
      %p422 = scmp.ne.s32.totalorder %s408, %s409
      %p423 = scmp.eq.s32.totalorder %s31, 1
      %p424 = por %p422, %p423
      %p426 = scmp.ne.s32.totalorder %s409, %s425
      %p427 = scmp.eq.s32.totalorder %s31, 0
      %p428 = por %p426, %p427
      %s430 = sadd.s32 %s429, 1
      %p433 = scmp.eq.s32.totalorder %s25, 1
      %p434 = scmp.ne.s32.totalorder %s429, %s431
      %p435 = scmp.eq.s32.totalorder %s25, 0
      %p436 = por %p434, %p435
      %p437 = scmp.ne.s32.totalorder %s429, %s431
      %p438 = scmp.eq.s32.totalorder %s30, 1
      %p439 = por %p437, %p438
      %p440 = scmp.ne.s32.totalorder %s431, %s432
      %p441 = scmp.eq.s32.totalorder %s30, 0
      %p442 = por %p440, %p441
      %p443 = scmp.ne.s32.totalorder %s431, %s432
      %p444 = scmp.eq.s32.totalorder %s31, 1
      %p445 = por %p443, %p444
      %p447 = scmp.ne.s32.totalorder %s432, %s446
      %p448 = scmp.eq.s32.totalorder %s31, 0
      %p449 = por %p447, %p448
      %s451 = sadd.s32 %s450, 1
      %p454 = scmp.eq.s32.totalorder %s25, 1
      %p455 = scmp.ne.s32.totalorder %s450, %s452
      %p456 = scmp.eq.s32.totalorder %s25, 0
      %p457 = por %p455, %p456
      %p458 = scmp.ne.s32.totalorder %s450, %s452
      %p459 = scmp.eq.s32.totalorder %s30, 1
      %p460 = por %p458, %p459
      %p461 = scmp.ne.s32.totalorder %s452, %s453
      %p462 = scmp.eq.s32.totalorder %s30, 0
      %p463 = por %p461, %p462
      %p464 = scmp.ne.s32.totalorder %s452, %s453
      %p465 = scmp.eq.s32.totalorder %s31, 1
      %p466 = por %p464, %p465
      %p468 = scmp.ne.s32.totalorder %s453, %s467
      %p469 = scmp.eq.s32.totalorder %s31, 0
      %p470 = por %p468, %p469
      %s472 = sadd.s32 %s471, 1
      %p475 = scmp.eq.s32.totalorder %s25, 1
      %p476 = scmp.ne.s32.totalorder %s471, %s473
      %p477 = scmp.eq.s32.totalorder %s25, 0
      %p478 = por %p476, %p477
      %p479 = scmp.ne.s32.totalorder %s471, %s473
      %p480 = scmp.eq.s32.totalorder %s30, 1
      %p481 = por %p479, %p480
      %p482 = scmp.ne.s32.totalorder %s473, %s474
      %p483 = scmp.eq.s32.totalorder %s30, 0
      %p484 = por %p482, %p483
      %p485 = scmp.ne.s32.totalorder %s473, %s474
      %p486 = scmp.eq.s32.totalorder %s31, 1
      %p487 = por %p485, %p486
      %p489 = scmp.ne.s32.totalorder %s474, %s488
      %p490 = scmp.eq.s32.totalorder %s31, 0
      %p491 = por %p489, %p490
      %p492 = scmp.le.s32.totalorder 1, %s25
      %p493 = scmp.lt.s32.totalorder %s25, 3
      %p494 = pnand %p492, %p493
      %p495 = pneg %p494
      // Predicated region
      $region9: #{bert_encoder_forward.1} parent=5 // pred_check
        _
      $region10: #{bert_encoder_forward.1} parent=5 // pred_check_branch
        %497 = sbr.rel (%p494) target = $region12
      $region11: #{bert_encoder_forward.1} parent=5 // pred_region
        %s498 = ssub.s32 %s25, 1
        // Predicated region
        $region13: #{bert_encoder_forward.1} parent=11 // pred_check
          %p499 = pneg %p46
        $region14: #{bert_encoder_forward.1} parent=11 // pred_check_branch
          %501 = sbr.rel (%p499) target = $region16
        $region15: #{bert_encoder_forward.1} parent=11 // pred_region
          _
        $region16: #{bert_encoder_forward.1} parent=11 // pred_fallthru
          _
        // Predicated region
        $region17: #{bert_encoder_forward.1} parent=11 // pred_check
          %p502 = pneg %p67
        $region18: #{bert_encoder_forward.1} parent=11 // pred_check_branch
          %504 = sbr.rel (%p502) target = $region20
        $region19: #{bert_encoder_forward.1} parent=11 // pred_region
          _
        $region20: #{bert_encoder_forward.1} parent=11 // pred_fallthru
          _
        // Predicated region
        $region21: #{bert_encoder_forward.1} parent=11 // pred_check
          %p505 = pneg %p88
        $region22: #{bert_encoder_forward.1} parent=11 // pred_check_branch
          %507 = sbr.rel (%p505) target = $region24
        $region23: #{bert_encoder_forward.1} parent=11 // pred_region
          _
        $region24: #{bert_encoder_forward.1} parent=11 // pred_fallthru
          _
        // Predicated region
        $region25: #{bert_encoder_forward.1} parent=11 // pred_check
          %p508 = pneg %p109
        $region26: #{bert_encoder_forward.1} parent=11 // pred_check_branch
          %510 = sbr.rel (%p508) target = $region28
        $region27: #{bert_encoder_forward.1} parent=11 // pred_region
          _
        $region28: #{bert_encoder_forward.1} parent=11 // pred_fallthru
          _
        // Predicated region
        $region29: #{bert_encoder_forward.1} parent=11 // pred_check
          %p511 = pneg %p442
        $region30: #{bert_encoder_forward.1} parent=11 // pred_check_branch
          %513 = sbr.rel (%p511) target = $region32
        $region31: #{bert_encoder_forward.1} parent=11 // pred_region
          _
        $region32: #{bert_encoder_forward.1} parent=11 // pred_fallthru
          _
        // Predicated region
        $region33: #{bert_encoder_forward.1} parent=11 // pred_check
          %p514 = pneg %p463
        $region34: #{bert_encoder_forward.1} parent=11 // pred_check_branch
          %516 = sbr.rel (%p514) target = $region36
        $region35: #{bert_encoder_forward.1} parent=11 // pred_region
          _
        $region36: #{bert_encoder_forward.1} parent=11 // pred_fallthru
          _
      $region12: #{bert_encoder_forward.1} parent=5 // pred_fallthru
        _
      %p517 = scmp.lt.s32.totalorder %s25, 2
      // Predicated region
      $region37: #{bert_encoder_forward.1} parent=5 // pred_check
        %p518 = pneg %p517
      $region38: #{bert_encoder_forward.1} parent=5 // pred_check_branch
        %520 = sbr.rel (%p518) target = $region40
      $region39: #{bert_encoder_forward.1} parent=5 // pred_region
        // Predicated region
        $region41: #{bert_encoder_forward.1} parent=39 // pred_check
          %p521 = pneg %p129
        $region42: #{bert_encoder_forward.1} parent=39 // pred_check_branch
          %523 = sbr.rel (%p521) target = $region44
        $region43: #{bert_encoder_forward.1} parent=39 // pred_region
          %p524 = scmp.lt.s32.totalorder %s25, 1
          %s525 = scalar_select %p524, %s25, 1
          %s526 = smul.addr %s525, 4
          %s527 = smul.addr %s526, 4
          %s528 = scalar_lea.vmem %s4, %s527
        $region44: #{bert_encoder_forward.1} parent=39 // pred_fallthru
          _
        // Predicated region
        $region45: #{bert_encoder_forward.1} parent=39 // pred_check
          %p529 = pneg %p155
        $region46: #{bert_encoder_forward.1} parent=39 // pred_check_branch
          %531 = sbr.rel (%p529) target = $region48
        $region47: #{bert_encoder_forward.1} parent=39 // pred_region
          %p532 = scmp.lt.s32.totalorder %s25, 1
          %s533 = scalar_select %p532, %s25, 1
          %s534 = scalar_lea.vmem %s5, %s533
        $region48: #{bert_encoder_forward.1} parent=39 // pred_fallthru
          _
        // Predicated region
        $region49: #{bert_encoder_forward.1} parent=39 // pred_check
          %p535 = pneg %p181
        $region50: #{bert_encoder_forward.1} parent=39 // pred_check_branch
          %537 = sbr.rel (%p535) target = $region52
        $region51: #{bert_encoder_forward.1} parent=39 // pred_region
          %p538 = scmp.lt.s32.totalorder %s25, 1
          %s539 = scalar_select %p538, %s25, 1
          %s540 = smul.addr %s539, 4
          %s541 = smul.addr %s540, 4
          %s542 = scalar_lea.vmem %s6, %s541
        $region52: #{bert_encoder_forward.1} parent=39 // pred_fallthru
          _
        // Predicated region
        $region53: #{bert_encoder_forward.1} parent=39 // pred_check
          %p543 = pneg %p207
        $region54: #{bert_encoder_forward.1} parent=39 // pred_check_branch
          %545 = sbr.rel (%p543) target = $region56
        $region55: #{bert_encoder_forward.1} parent=39 // pred_region
          %p546 = scmp.lt.s32.totalorder %s25, 1
          %s547 = scalar_select %p546, %s25, 1
          %s548 = scalar_lea.vmem %s7, %s547
        $region56: #{bert_encoder_forward.1} parent=39 // pred_fallthru
          _
        // Predicated region
        $region57: #{bert_encoder_forward.1} parent=39 // pred_check
          %p549 = pneg %p233
        $region58: #{bert_encoder_forward.1} parent=39 // pred_check_branch
          %551 = sbr.rel (%p549) target = $region60
        $region59: #{bert_encoder_forward.1} parent=39 // pred_region
          %p552 = scmp.lt.s32.totalorder %s25, 1
          %s553 = scalar_select %p552, %s25, 1
          %s554 = scalar_lea.vmem %s8, %s553
        $region60: #{bert_encoder_forward.1} parent=39 // pred_fallthru
          _
        // Predicated region
        $region61: #{bert_encoder_forward.1} parent=39 // pred_check
          %p555 = pneg %p259
        $region62: #{bert_encoder_forward.1} parent=39 // pred_check_branch
          %557 = sbr.rel (%p555) target = $region64
        $region63: #{bert_encoder_forward.1} parent=39 // pred_region
          %p558 = scmp.lt.s32.totalorder %s25, 1
          %s559 = scalar_select %p558, %s25, 1
          %s560 = scalar_lea.vmem %s9, %s559
        $region64: #{bert_encoder_forward.1} parent=39 // pred_fallthru
          _
        // Predicated region
        $region65: #{bert_encoder_forward.1} parent=39 // pred_check
          %p561 = pneg %p285
        $region66: #{bert_encoder_forward.1} parent=39 // pred_check_branch
          %563 = sbr.rel (%p561) target = $region68
        $region67: #{bert_encoder_forward.1} parent=39 // pred_region
          %p564 = scmp.lt.s32.totalorder %s25, 1
          %s565 = scalar_select %p564, %s25, 1
          %s566 = smul.addr %s565, 4
          %s567 = smul.addr %s566, 4
          %s568 = scalar_lea.vmem %s10, %s567
        $region68: #{bert_encoder_forward.1} parent=39 // pred_fallthru
          _
        // Predicated region
        $region69: #{bert_encoder_forward.1} parent=39 // pred_check
          %p569 = pneg %p311
        $region70: #{bert_encoder_forward.1} parent=39 // pred_check_branch
          %571 = sbr.rel (%p569) target = $region72
        $region71: #{bert_encoder_forward.1} parent=39 // pred_region
          %p572 = scmp.lt.s32.totalorder %s25, 1
          %s573 = scalar_select %p572, %s25, 1
          %s574 = scalar_lea.vmem %s11, %s573
        $region72: #{bert_encoder_forward.1} parent=39 // pred_fallthru
          _
        // Predicated region
        $region73: #{bert_encoder_forward.1} parent=39 // pred_check
          %p575 = pneg %p337
        $region74: #{bert_encoder_forward.1} parent=39 // pred_check_branch
          %577 = sbr.rel (%p575) target = $region76
        $region75: #{bert_encoder_forward.1} parent=39 // pred_region
          %p578 = scmp.lt.s32.totalorder %s25, 1
          %s579 = scalar_select %p578, %s25, 1
          %s580 = smul.addr %s579, 8
          %s581 = smul.addr %s580, 4
          %s582 = scalar_lea.vmem %s12, %s581
        $region76: #{bert_encoder_forward.1} parent=39 // pred_fallthru
          _
        // Predicated region
        $region77: #{bert_encoder_forward.1} parent=39 // pred_check
          %p583 = pneg %p363
        $region78: #{bert_encoder_forward.1} parent=39 // pred_check_branch
          %585 = sbr.rel (%p583) target = $region80
        $region79: #{bert_encoder_forward.1} parent=39 // pred_region
          %p586 = scmp.lt.s32.totalorder %s25, 1
          %s587 = scalar_select %p586, %s25, 1
          %s588 = scalar_lea.vmem %s13, %s587
        $region80: #{bert_encoder_forward.1} parent=39 // pred_fallthru
          _
        // Predicated region
        $region81: #{bert_encoder_forward.1} parent=39 // pred_check
          %p589 = pneg %p389
        $region82: #{bert_encoder_forward.1} parent=39 // pred_check_branch
          %591 = sbr.rel (%p589) target = $region84
        $region83: #{bert_encoder_forward.1} parent=39 // pred_region
          %p592 = scmp.lt.s32.totalorder %s25, 1
          %s593 = scalar_select %p592, %s25, 1
          %s594 = scalar_lea.vmem %s14, %s593
        $region84: #{bert_encoder_forward.1} parent=39 // pred_fallthru
          _
        // Predicated region
        $region85: #{bert_encoder_forward.1} parent=39 // pred_check
          %p595 = pneg %p415
        $region86: #{bert_encoder_forward.1} parent=39 // pred_check_branch
          %597 = sbr.rel (%p595) target = $region88
        $region87: #{bert_encoder_forward.1} parent=39 // pred_region
          %p598 = scmp.lt.s32.totalorder %s25, 1
          %s599 = scalar_select %p598, %s25, 1
          %s600 = scalar_lea.vmem %s15, %s599
        $region88: #{bert_encoder_forward.1} parent=39 // pred_fallthru
          _
      $region40: #{bert_encoder_forward.1} parent=5 // pred_fallthru
        _
      %p601 = scmp.le.s32.totalorder 1, %s25
      %p602 = scmp.lt.s32.totalorder %s25, 3
      %p603 = pnand %p601, %p602
      %p604 = pneg %p603
      // Predicated region
      $region89: #{bert_encoder_forward.1} parent=5 // pred_check
        _
      $region90: #{bert_encoder_forward.1} parent=5 // pred_check_branch
        %606 = sbr.rel (%p603) target = $region92
      $region91: #{bert_encoder_forward.1} parent=5 // pred_region
        %s607 = ssub.s32 %s25, 1
        %p608 = pneg %p46
        %p609 = pneg %p43
        %p610 = pneg %p67
        %p611 = pneg %p64
        %p612 = pneg %p88
        %p613 = pneg %p85
        %p614 = pneg %p109
        %p615 = pneg %p106
        %p616 = scmp.lt.s32.totalorder %s30, 1
        %s617 = scalar_select %p616, %s30, 1
        %s618 = smul.addr %s617, 4
        %s619 = smul.addr %s618, 4
        %s620 = scalar_lea.vmem %s4, %s619
        %p621 = pneg %p135
        %p622 = pneg %p132
        %p623 = scmp.lt.s32.totalorder %s30, 1
        %s624 = scalar_select %p623, %s30, 1
        %s625 = scalar_lea.vmem %s5, %s624
        %p626 = pneg %p161
        %p627 = pneg %p158
        %p628 = scmp.lt.s32.totalorder %s30, 1
        %s629 = scalar_select %p628, %s30, 1
        %s630 = smul.addr %s629, 4
        %s631 = smul.addr %s630, 4
        %s632 = scalar_lea.vmem %s6, %s631
        %p633 = pneg %p187
        %p634 = pneg %p184
        %p635 = scmp.lt.s32.totalorder %s30, 1
        %s636 = scalar_select %p635, %s30, 1
        %s637 = scalar_lea.vmem %s7, %s636
        %p638 = pneg %p213
        %p639 = pneg %p210
        %p640 = scmp.lt.s32.totalorder %s30, 1
        %s641 = scalar_select %p640, %s30, 1
        %s642 = scalar_lea.vmem %s8, %s641
        %p643 = pneg %p239
        %p644 = pneg %p236
        %p645 = scmp.lt.s32.totalorder %s30, 1
        %s646 = scalar_select %p645, %s30, 1
        %s647 = scalar_lea.vmem %s9, %s646
        %p648 = pneg %p265
        %p649 = pneg %p262
        %p650 = scmp.lt.s32.totalorder %s30, 1
        %s651 = scalar_select %p650, %s30, 1
        %s652 = smul.addr %s651, 4
        %s653 = smul.addr %s652, 4
        %s654 = scalar_lea.vmem %s10, %s653
        %p655 = pneg %p291
        %p656 = pneg %p288
        %p657 = scmp.lt.s32.totalorder %s30, 1
        %s658 = scalar_select %p657, %s30, 1
        %s659 = scalar_lea.vmem %s11, %s658
        %p660 = pneg %p317
        %p661 = pneg %p314
        %p662 = scmp.lt.s32.totalorder %s30, 1
        %s663 = scalar_select %p662, %s30, 1
        %s664 = smul.addr %s663, 8
        %s665 = smul.addr %s664, 4
        %s666 = scalar_lea.vmem %s12, %s665
        %p667 = pneg %p343
        %p668 = pneg %p340
        %p669 = scmp.lt.s32.totalorder %s30, 1
        %s670 = scalar_select %p669, %s30, 1
        %s671 = scalar_lea.vmem %s13, %s670
        %p672 = pneg %p369
        %p673 = pneg %p366
        %p674 = scmp.lt.s32.totalorder %s30, 1
        %s675 = scalar_select %p674, %s30, 1
        %s676 = scalar_lea.vmem %s14, %s675
        %p677 = pneg %p395
        %p678 = pneg %p392
        %p679 = scmp.lt.s32.totalorder %s30, 1
        %s680 = scalar_select %p679, %s30, 1
        %s681 = scalar_lea.vmem %s15, %s680
        %p682 = pneg %p421
        %p683 = pneg %p418
        %p684 = pneg %p442
        %p685 = pneg %p439
        %p686 = pneg %p463
        %p687 = pneg %p460
        %p688 = pneg %p484
        %p689 = pneg %p481
        %p690 = scmp.lt.s32.totalorder %s30, 1
        %s691 = scalar_select %p690, %s30, 1
        %s692 = smul.addr %s691, 4
        %s693 = smul.addr %s692, 4
        %s694 = scalar_lea.vmem %s4, %s693
        %p695 = scmp.lt.s32.totalorder %s30, 1
        %s696 = scalar_select %p695, %s30, 1
        %s697 = scalar_lea.vmem %s5, %s696
        %p698 = scmp.lt.s32.totalorder %s30, 1
        %s699 = scalar_select %p698, %s30, 1
        %s700 = smul.addr %s699, 4
        %s701 = smul.addr %s700, 4
        %s702 = scalar_lea.vmem %s6, %s701
        %p703 = scmp.lt.s32.totalorder %s30, 1
        %s704 = scalar_select %p703, %s30, 1
        %s705 = scalar_lea.vmem %s7, %s704
        %p706 = scmp.lt.s32.totalorder %s30, 1
        %s707 = scalar_select %p706, %s30, 1
        %s708 = scalar_lea.vmem %s8, %s707
        %p709 = scmp.lt.s32.totalorder %s30, 1
        %s710 = scalar_select %p709, %s30, 1
        %s711 = scalar_lea.vmem %s9, %s710
        %p712 = scmp.lt.s32.totalorder %s30, 1
        %s713 = scalar_select %p712, %s30, 1
        %s714 = smul.addr %s713, 4
        %s715 = smul.addr %s714, 4
        %s716 = scalar_lea.vmem %s10, %s715
        %p717 = scmp.lt.s32.totalorder %s30, 1
        %s718 = scalar_select %p717, %s30, 1
        %s719 = scalar_lea.vmem %s11, %s718
        %p720 = scmp.lt.s32.totalorder %s30, 1
        %s721 = scalar_select %p720, %s30, 1
        %s722 = smul.addr %s721, 8
        %s723 = smul.addr %s722, 4
        %s724 = scalar_lea.vmem %s12, %s723
        %p725 = scmp.lt.s32.totalorder %s30, 1
        %s726 = scalar_select %p725, %s30, 1
        %s727 = scalar_lea.vmem %s13, %s726
        %p728 = scmp.lt.s32.totalorder %s30, 1
        %s729 = scalar_select %p728, %s30, 1
        %s730 = scalar_lea.vmem %s14, %s729
        %p731 = scmp.lt.s32.totalorder %s30, 1
        %s732 = scalar_select %p731, %s30, 1
        %s733 = scalar_lea.vmem %s15, %s732
        %p735 = scmp.eq.s32.totalorder %s30, 0
        // Predicated region
        $region93: #{bert_encoder_forward.1} parent=91 // pred_check
          %p736 = pneg %p735
        $region94: #{bert_encoder_forward.1} parent=91 // pred_check_branch
          %738 = sbr.rel (%p736) target = $region96
        $region95: #{bert_encoder_forward.1} parent=91 // pred_region
          %v739 = vld [vmem:[%s0] sm:$0xff]
          %v740 = vld [vmem:[%s0 + $0x8] sm:$0xff]
          %v741 = vld [vmem:[%s2] sm:$0x1]
          %v742 = vld [vmem:[%s3] sm:$0x1]
          %vm743 = vcmask 261120
          %v744 = vsel %vm743, %v739, 0.0
          %745 = vadd.xlane.f32.xlu0 %v744
          %v746 = vpop.xlane.xlu0 %745
          %v747 = vsel %vm743, %v740, 0.0
          %748 = vadd.xlane.f32.xlu0 %v747
          %v749 = vpop.xlane.xlu0 %748
          %v750 = vrcp.pop 32.0
          %v751 = vmul.f32 %v746, %v750
          %v752 = vmul.f32 %v749, %v750
          %v753 = vsub.f32 %v739, %v751
          %v754 = vsub.f32 %v740, %v752
          %v755 = vmul.f32 %v753, %v753
          %v756 = vmul.f32 %v754, %v754
          %v757 = vsel %vm743, %v755, 0.0
          %758 = vadd.xlane.f32.xlu0 %v757
          %v759 = vpop.xlane.xlu0 %758
          %v760 = vsel %vm743, %v756, 0.0
          %761 = vadd.xlane.f32.xlu0 %v760
          %v762 = vpop.xlane.xlu0 %761
          %v763 = vmul.f32 %v759, %v750
          %v764 = vmul.f32 %v762, %v750
          %v765 = vadd.f32 %v763, 1e-12
          %v766 = vadd.f32 %v764, 1e-12
          %v767 = vrsqrt.pop %v765
          %v768 = vrsqrt.pop %v766
          %v769 = vmul.f32 %v753, %v767
          %v770 = vmul.f32 %v754, %v768
          %v772 = vlaneseq
          %v773 = vshrl.u32 %v772, 7
          %v774 = vsub.s32 0, %v773
          %v775 = vrot.slane %v741, %v774
          %v777 = vmul.f32 %v769, %v775
          %v778 = vmul.f32 %v770, %v775
          %v780 = vlaneseq
          %v781 = vshrl.u32 %v780, 7
          %v782 = vsub.s32 0, %v781
          %v783 = vrot.slane %v742, %v782
          %v785 = vadd.f32 %v777, %v783
          %v786 = vadd.f32 %v778, %v783
          %787 = vst.msk [vmem:[#allocation2] sm:$0xff] %vm743, %v785
          %788 = vst.msk [vmem:[#allocation2 + $0x8] sm:$0xff] %vm743, %v786
        $region96: #{bert_encoder_forward.1} parent=91 // pred_fallthru
          _
        %v789 = vld [vmem:[#allocation2] sm:$0xff]
        %v790 = vld [vmem:[#allocation2 + $0x8] sm:$0xff]
        %v791 = vpack.c.bf16 %v790, %v789
        %v792 = vld [vmem:[%s694] sm:$0xf]
        %v793 = vld [vmem:[%s694 + $0x4] sm:$0xf]
        %v794 = vld [vmem:[%s694 + $0x8] sm:$0xf]
        %v795 = vld [vmem:[%s694 + $0xc] sm:$0xf]
        %v796 = vld [vmem:[%s697] sm:$0x1]
        %v798 = vlaneseq
        %v799 = vshrl.u32 %v798, 7
        %v800 = vsub.s32 0, %v799
        %v801 = vrot.slane %v796, %v800
        %v807 = vunpack.c.l.b16 %v792
        %v808 = vunpack.c.l.b16 %v793
        %v809 = vunpack.c.l.b16 %v794
        %v810 = vunpack.c.l.b16 %v795
        %v811 = vpack.c.b16 %v808, %v807
        %v812 = vpack.c.b16 %v810, %v809
        %vm815 = vcmask 261120
        %v817 = vsel %vm815, %v791, 0
        %819 = vmatprep.subr.bf16.mxu0 0
        %820 = vmatpush1.bf16.msra.mxu0 0
        %821 = vmatprep.subr.bf16.mxu0 0
        %822 = vmatpush1.bf16.msra.mxu0 0
        %823 = vmatprep.subr.bf16.mxu0 0
        %824 = vmatpush1.bf16.msra.mxu0 0
        %825 = vmatprep.subr.bf16.mxu0 0
        %826 = vmatpush1.bf16.msra.mxu0 0
        %827 = vmatprep.subr.bf16.mxu0 0
        %828 = vmatpush1.bf16.msra.mxu0 0
        %829 = vmatprep.subr.bf16.mxu0 0
        %830 = vmatpush1.bf16.msra.mxu0 0
        %831 = vmatprep.subr.bf16.mxu0 0
        %832 = vmatpush1.bf16.msra.mxu0 %v812
        %833 = vmatprep.subr.bf16.mxu0 0
        %834 = vmatpush1.bf16.msra.mxu0 %v811
        %835 = vmatprep.subr.bf16.mxu0 0
        %836 = vmatpush2.bf16.msra.mxu0 0
        %837 = vmatprep.subr.bf16.mxu0 0
        %838 = vmatpush2.bf16.msra.mxu0 0
        %839 = vmatprep.subr.bf16.mxu0 0
        %840 = vmatpush2.bf16.msra.mxu0 0
        %841 = vmatprep.subr.bf16.mxu0 0
        %842 = vmatpush2.bf16.msra.mxu0 0
        %843 = vmatprep.subr.bf16.mxu0 0
        %844 = vmatpush2.bf16.msra.mxu0 0
        %845 = vmatprep.subr.bf16.mxu0 0
        %846 = vmatpush2.bf16.msra.mxu0 0
        %847 = vmatprep.subr.bf16.mxu0 0
        %848 = vmatpush2.bf16.msra.mxu0 0
        %849 = vmatprep.subr.bf16.mxu0 0
        %850 = vmatpush2.bf16.msra.mxu0 0
        %851 = vmatprep.mubr.bf16.mxu0 0
        %852 = vmatmul.mubr.bf16.gmra.mxu0 %v817
        %v853 = vpop.f32.mrf.mxu0
        %v854 = vadd.f32 %v801, %v853
        %v855 = vpop.f32.mrf.mxu0
        %v856 = vpop.f32.mrf.mxu0
        %v857 = vadd.f32 %v801, %v856
        %v858 = vpop.f32.mrf.mxu0
        %859 = vdwg.mxu0
        %v860 = vld [vmem:[%s1] sm:$0x1]
        %v861 = vld [vmem:[%s1 + $0x1] sm:$0x1]
        %v862 = vpack.c.bf16 %v854, %v854
        %v863 = vpack.c.bf16 %v857, %v857
        %v866 = vlaneseq
        %v867 = vshrl.u32 %v866, 7
        %v868 = vsub.s32 0, %v867
        %v869 = vrot.slane %v860, %v868
        %v870 = vlaneseq
        %v871 = vshrl.u32 %v870, 7
        %v872 = vsub.s32 0, %v871
        %v873 = vrot.slane %v861, %v872
        %877 = vrot.lane.b32.xlu0 %v862, 96
        %v878 = vpop.permute.xlu0 %877
        %vm879 = vcmask 64512
        %v881 = vsel %vm879, %v862, 0
        %v884 = vsel %vm879, %v878, 0
        %886 = vmatprep.subr.bf16.mxu0 0
        %887 = vmatpush1.bf16.xpose.msra.mxu0 0
        %888 = vmatprep.subr.bf16.mxu0 0
        %889 = vmatpush1.bf16.xpose.msra.mxu0 0
        %890 = vmatprep.subr.bf16.mxu0 0
        %891 = vmatpush1.bf16.xpose.msra.mxu0 0
        %892 = vmatprep.subr.bf16.mxu0 0
        %893 = vmatpush1.bf16.xpose.msra.mxu0 0
        %894 = vmatprep.subr.bf16.mxu0 0
        %895 = vmatpush1.bf16.xpose.msra.mxu0 0
        %896 = vmatprep.subr.bf16.mxu0 0
        %897 = vmatpush1.bf16.xpose.msra.mxu0 0
        %898 = vmatprep.subr.bf16.mxu0 0
        %899 = vmatpush1.bf16.xpose.msra.mxu0 0
        %900 = vmatprep.subr.bf16.mxu0 0
        %901 = vmatpush1.bf16.xpose.msra.mxu0 %v884
        %902 = vmatprep.subr.bf16.mxu0 0
        %903 = vmatpush2.bf16.xpose.msra.mxu0 0
        %904 = vmatprep.subr.bf16.mxu0 0
        %905 = vmatpush2.bf16.xpose.msra.mxu0 0
        %906 = vmatprep.subr.bf16.mxu0 0
        %907 = vmatpush2.bf16.xpose.msra.mxu0 0
        %908 = vmatprep.subr.bf16.mxu0 0
        %909 = vmatpush2.bf16.xpose.msra.mxu0 0
        %910 = vmatprep.subr.bf16.mxu0 0
        %911 = vmatpush2.bf16.xpose.msra.mxu0 0
        %912 = vmatprep.subr.bf16.mxu0 0
        %913 = vmatpush2.bf16.xpose.msra.mxu0 0
        %914 = vmatprep.subr.bf16.mxu0 0
        %915 = vmatpush2.bf16.xpose.msra.mxu0 0
        %916 = vmatprep.subr.bf16.mxu0 0
        %917 = vmatpush2.bf16.xpose.msra.mxu0 0
        %918 = vmatprep.mubr.bf16.mxu0 0
        %919 = vmatmul.mubr.bf16.gmra.mxu0 %v881
        %v920 = vpop.f32.mrf.mxu0
        %v921 = vadd.f32 %v869, %v920
        %v922 = vpop.f32.mrf.mxu0
        %v923 = vpop.f32.mrf.mxu0
        %v924 = vpop.f32.mrf.mxu0
        %925 = vdwg.mxu0
        %927 = vrot.lane.b32.xlu0 %v863, 96
        %v928 = vpop.permute.xlu0 %927
        %v930 = vsel %vm879, %v863, 0
        %v933 = vsel %vm879, %v928, 0
        %935 = vmatprep.subr.bf16.mxu0 0
        %936 = vmatpush1.bf16.xpose.msra.mxu0 0
        %937 = vmatprep.subr.bf16.mxu0 0
        %938 = vmatpush1.bf16.xpose.msra.mxu0 0
        %939 = vmatprep.subr.bf16.mxu0 0
        %940 = vmatpush1.bf16.xpose.msra.mxu0 0
        %941 = vmatprep.subr.bf16.mxu0 0
        %942 = vmatpush1.bf16.xpose.msra.mxu0 0
        %943 = vmatprep.subr.bf16.mxu0 0
        %944 = vmatpush1.bf16.xpose.msra.mxu0 0
        %945 = vmatprep.subr.bf16.mxu0 0
        %946 = vmatpush1.bf16.xpose.msra.mxu0 0
        %947 = vmatprep.subr.bf16.mxu0 0
        %948 = vmatpush1.bf16.xpose.msra.mxu0 0
        %949 = vmatprep.subr.bf16.mxu0 0
        %950 = vmatpush1.bf16.xpose.msra.mxu0 %v933
        %951 = vmatprep.subr.bf16.mxu0 0
        %952 = vmatpush2.bf16.xpose.msra.mxu0 0
        %953 = vmatprep.subr.bf16.mxu0 0
        %954 = vmatpush2.bf16.xpose.msra.mxu0 0
        %955 = vmatprep.subr.bf16.mxu0 0
        %956 = vmatpush2.bf16.xpose.msra.mxu0 0
        %957 = vmatprep.subr.bf16.mxu0 0
        %958 = vmatpush2.bf16.xpose.msra.mxu0 0
        %959 = vmatprep.subr.bf16.mxu0 0
        %960 = vmatpush2.bf16.xpose.msra.mxu0 0
        %961 = vmatprep.subr.bf16.mxu0 0
        %962 = vmatpush2.bf16.xpose.msra.mxu0 0
        %963 = vmatprep.subr.bf16.mxu0 0
        %964 = vmatpush2.bf16.xpose.msra.mxu0 0
        %965 = vmatprep.subr.bf16.mxu0 0
        %966 = vmatpush2.bf16.xpose.msra.mxu0 0
        %967 = vmatprep.mubr.bf16.mxu0 0
        %968 = vmatmul.mubr.bf16.gmra.mxu0 %v930
        %v969 = vpop.f32.mrf.mxu0
        %v970 = vadd.f32 %v873, %v969
        %v971 = vpop.f32.mrf.mxu0
        %v972 = vpop.f32.mrf.mxu0
        %v973 = vpop.f32.mrf.mxu0
        %974 = vdwg.mxu0
        %v975 = vsel %vm879, %v921, -inf
        %976 = vmax.xlane.f32.xlu0 %v975
        %v977 = vpop.xlane.xlu0 %976
        %v978 = vsel %vm879, %v970, -inf
        %979 = vmax.xlane.f32.xlu0 %v978
        %v980 = vpop.xlane.xlu0 %979
        %v981 = vsub.f32 %v921, %v977
        %v982 = vsub.f32 %v970, %v980
        %v983 = vmul.f32 %v981, 1.442695
        %v984 = vpow.pop %v983
        %v985 = vmul.f32 %v982, 1.442695
        %v986 = vpow.pop %v985
        %v987 = vsel %vm879, %v984, 0.0
        %988 = vadd.xlane.f32.xlu0 %v987
        %v989 = vpop.xlane.xlu0 %988
        %v990 = vsel %vm879, %v986, 0.0
        %991 = vadd.xlane.f32.xlu0 %v990
        %v992 = vpop.xlane.xlu0 %991
        %v993 = vrcp.pop %v989
        %v994 = vrcp.pop %v992
        %v995 = vmul.f32 %v984, %v993
        %v996 = vmul.f32 %v986, %v994
        %v997 = vpack.c.bf16 %v995, %v995
        %v998 = vpack.c.bf16 %v996, %v996
        %999 = vrot.lane.b32.xlu0 %v862, 64
        %v1000 = vpop.permute.xlu0 %999
        %v1002 = vsel %vm879, %v997, 0
        %vm1004 = vcmask 1043456
        %v1006 = vsel %vm1004, %v1000, 0
        %1008 = vmatprep.subr.bf16.mxu0 0
        %1009 = vmatpush1.bf16.msra.mxu0 0
        %1010 = vmatprep.subr.bf16.mxu0 0
        %1011 = vmatpush1.bf16.msra.mxu0 0
        %1012 = vmatprep.subr.bf16.mxu0 0
        %1013 = vmatpush1.bf16.msra.mxu0 0
        %1014 = vmatprep.subr.bf16.mxu0 0
        %1015 = vmatpush1.bf16.msra.mxu0 0
        %1016 = vmatprep.subr.bf16.mxu0 0
        %1017 = vmatpush1.bf16.msra.mxu0 0
        %1018 = vmatprep.subr.bf16.mxu0 0
        %1019 = vmatpush1.bf16.msra.mxu0 0
        %1020 = vmatprep.subr.bf16.mxu0 0
        %1021 = vmatpush1.bf16.msra.mxu0 0
        %1022 = vmatprep.subr.bf16.mxu0 0
        %1023 = vmatpush1.bf16.msra.mxu0 %v1006
        %1024 = vmatprep.subr.bf16.mxu0 0
        %1025 = vmatpush2.bf16.msra.mxu0 0
        %1026 = vmatprep.subr.bf16.mxu0 0
        %1027 = vmatpush2.bf16.msra.mxu0 0
        %1028 = vmatprep.subr.bf16.mxu0 0
        %1029 = vmatpush2.bf16.msra.mxu0 0
        %1030 = vmatprep.subr.bf16.mxu0 0
        %1031 = vmatpush2.bf16.msra.mxu0 0
        %1032 = vmatprep.subr.bf16.mxu0 0
        %1033 = vmatpush2.bf16.msra.mxu0 0
        %1034 = vmatprep.subr.bf16.mxu0 0
        %1035 = vmatpush2.bf16.msra.mxu0 0
        %1036 = vmatprep.subr.bf16.mxu0 0
        %1037 = vmatpush2.bf16.msra.mxu0 0
        %1038 = vmatprep.subr.bf16.mxu0 0
        %1039 = vmatpush2.bf16.msra.mxu0 0
        %1040 = vmatprep.mubr.bf16.mxu0 0
        %1041 = vmatmul.mubr.bf16.gmra.mxu0 %v1002
        %v1042 = vpop.f32.mrf.mxu0
        %v1043 = vadd.f32 0.0, %v1042
        %v1044 = vpop.f32.mrf.mxu0
        %v1045 = vpop.f32.mrf.mxu0
        %v1046 = vpop.f32.mrf.mxu0
        %1047 = vdwg.mxu0
        %1048 = vrot.lane.b32.xlu0 %v863, 64
        %v1049 = vpop.permute.xlu0 %1048
        %v1051 = vsel %vm879, %v998, 0
        %v1054 = vsel %vm1004, %v1049, 0
        %1056 = vmatprep.subr.bf16.mxu0 0
        %1057 = vmatpush1.bf16.msra.mxu0 0
        %1058 = vmatprep.subr.bf16.mxu0 0
        %1059 = vmatpush1.bf16.msra.mxu0 0
        %1060 = vmatprep.subr.bf16.mxu0 0
        %1061 = vmatpush1.bf16.msra.mxu0 0
        %1062 = vmatprep.subr.bf16.mxu0 0
        %1063 = vmatpush1.bf16.msra.mxu0 0
        %1064 = vmatprep.subr.bf16.mxu0 0
        %1065 = vmatpush1.bf16.msra.mxu0 0
        %1066 = vmatprep.subr.bf16.mxu0 0
        %1067 = vmatpush1.bf16.msra.mxu0 0
        %1068 = vmatprep.subr.bf16.mxu0 0
        %1069 = vmatpush1.bf16.msra.mxu0 0
        %1070 = vmatprep.subr.bf16.mxu0 0
        %1071 = vmatpush1.bf16.msra.mxu0 %v1054
        %1072 = vmatprep.subr.bf16.mxu0 0
        %1073 = vmatpush2.bf16.msra.mxu0 0
        %1074 = vmatprep.subr.bf16.mxu0 0
        %1075 = vmatpush2.bf16.msra.mxu0 0
        %1076 = vmatprep.subr.bf16.mxu0 0
        %1077 = vmatpush2.bf16.msra.mxu0 0
        %1078 = vmatprep.subr.bf16.mxu0 0
        %1079 = vmatpush2.bf16.msra.mxu0 0
        %1080 = vmatprep.subr.bf16.mxu0 0
        %1081 = vmatpush2.bf16.msra.mxu0 0
        %1082 = vmatprep.subr.bf16.mxu0 0
        %1083 = vmatpush2.bf16.msra.mxu0 0
        %1084 = vmatprep.subr.bf16.mxu0 0
        %1085 = vmatpush2.bf16.msra.mxu0 0
        %1086 = vmatprep.subr.bf16.mxu0 0
        %1087 = vmatpush2.bf16.msra.mxu0 0
        %1088 = vmatprep.mubr.bf16.mxu0 0
        %1089 = vmatmul.mubr.bf16.gmra.mxu0 %v1051
        %v1090 = vpop.f32.mrf.mxu0
        %v1091 = vadd.f32 0.0, %v1090
        %v1092 = vpop.f32.mrf.mxu0
        %v1093 = vpop.f32.mrf.mxu0
        %v1094 = vpop.f32.mrf.mxu0
        %1095 = vdwg.mxu0
        %1096 = vst.msk [vmem:[#allocation3] sm:$0xff] %vm879, %v1043
        %1097 = vst.msk [vmem:[#allocation3 + $0x8] sm:$0xff] %vm879, %v1091
        %1098 = vrot.lane.b32.xlu0 %v862, 120
        %v1099 = vpop.permute.xlu0 %1098
        %1100 = vrot.lane.b32.xlu0 %v862, 88
        %v1101 = vpop.permute.xlu0 %1100
        %v1103 = vsel %vm879, %v1099, 0
        %v1106 = vsel %vm879, %v1101, 0
        %1108 = vmatprep.subr.bf16.mxu0 0
        %1109 = vmatpush1.bf16.xpose.msra.mxu0 0
        %1110 = vmatprep.subr.bf16.mxu0 0
        %1111 = vmatpush1.bf16.xpose.msra.mxu0 0
        %1112 = vmatprep.subr.bf16.mxu0 0
        %1113 = vmatpush1.bf16.xpose.msra.mxu0 0
        %1114 = vmatprep.subr.bf16.mxu0 0
        %1115 = vmatpush1.bf16.xpose.msra.mxu0 0
        %1116 = vmatprep.subr.bf16.mxu0 0
        %1117 = vmatpush1.bf16.xpose.msra.mxu0 0
        %1118 = vmatprep.subr.bf16.mxu0 0
        %1119 = vmatpush1.bf16.xpose.msra.mxu0 0
        %1120 = vmatprep.subr.bf16.mxu0 0
        %1121 = vmatpush1.bf16.xpose.msra.mxu0 0
        %1122 = vmatprep.subr.bf16.mxu0 0
        %1123 = vmatpush1.bf16.xpose.msra.mxu0 %v1106
        %1124 = vmatprep.subr.bf16.mxu0 0
        %1125 = vmatpush2.bf16.xpose.msra.mxu0 0
        %1126 = vmatprep.subr.bf16.mxu0 0
        %1127 = vmatpush2.bf16.xpose.msra.mxu0 0
        %1128 = vmatprep.subr.bf16.mxu0 0
        %1129 = vmatpush2.bf16.xpose.msra.mxu0 0
        %1130 = vmatprep.subr.bf16.mxu0 0
        %1131 = vmatpush2.bf16.xpose.msra.mxu0 0
        %1132 = vmatprep.subr.bf16.mxu0 0
        %1133 = vmatpush2.bf16.xpose.msra.mxu0 0
        %1134 = vmatprep.subr.bf16.mxu0 0
        %1135 = vmatpush2.bf16.xpose.msra.mxu0 0
        %1136 = vmatprep.subr.bf16.mxu0 0
        %1137 = vmatpush2.bf16.xpose.msra.mxu0 0
        %1138 = vmatprep.subr.bf16.mxu0 0
        %1139 = vmatpush2.bf16.xpose.msra.mxu0 0
        %1140 = vmatprep.mubr.bf16.mxu0 0
        %1141 = vmatmul.mubr.bf16.gmra.mxu0 %v1103
        %v1142 = vpop.f32.mrf.mxu0
        %v1143 = vadd.f32 %v869, %v1142
        %v1144 = vpop.f32.mrf.mxu0
        %v1145 = vpop.f32.mrf.mxu0
        %v1146 = vpop.f32.mrf.mxu0
        %1147 = vdwg.mxu0
        %1148 = vrot.lane.b32.xlu0 %v863, 120
        %v1149 = vpop.permute.xlu0 %1148
        %1150 = vrot.lane.b32.xlu0 %v863, 88
        %v1151 = vpop.permute.xlu0 %1150
        %v1153 = vsel %vm879, %v1149, 0
        %v1156 = vsel %vm879, %v1151, 0
        %1158 = vmatprep.subr.bf16.mxu0 0
        %1159 = vmatpush1.bf16.xpose.msra.mxu0 0
        %1160 = vmatprep.subr.bf16.mxu0 0
        %1161 = vmatpush1.bf16.xpose.msra.mxu0 0
        %1162 = vmatprep.subr.bf16.mxu0 0
        %1163 = vmatpush1.bf16.xpose.msra.mxu0 0
        %1164 = vmatprep.subr.bf16.mxu0 0
        %1165 = vmatpush1.bf16.xpose.msra.mxu0 0
        %1166 = vmatprep.subr.bf16.mxu0 0
        %1167 = vmatpush1.bf16.xpose.msra.mxu0 0
        %1168 = vmatprep.subr.bf16.mxu0 0
        %1169 = vmatpush1.bf16.xpose.msra.mxu0 0
        %1170 = vmatprep.subr.bf16.mxu0 0
        %1171 = vmatpush1.bf16.xpose.msra.mxu0 0
        %1172 = vmatprep.subr.bf16.mxu0 0
        %1173 = vmatpush1.bf16.xpose.msra.mxu0 %v1156
        %1174 = vmatprep.subr.bf16.mxu0 0
        %1175 = vmatpush2.bf16.xpose.msra.mxu0 0
        %1176 = vmatprep.subr.bf16.mxu0 0
        %1177 = vmatpush2.bf16.xpose.msra.mxu0 0
        %1178 = vmatprep.subr.bf16.mxu0 0
        %1179 = vmatpush2.bf16.xpose.msra.mxu0 0
        %1180 = vmatprep.subr.bf16.mxu0 0
        %1181 = vmatpush2.bf16.xpose.msra.mxu0 0
        %1182 = vmatprep.subr.bf16.mxu0 0
        %1183 = vmatpush2.bf16.xpose.msra.mxu0 0
        %1184 = vmatprep.subr.bf16.mxu0 0
        %1185 = vmatpush2.bf16.xpose.msra.mxu0 0
        %1186 = vmatprep.subr.bf16.mxu0 0
        %1187 = vmatpush2.bf16.xpose.msra.mxu0 0
        %1188 = vmatprep.subr.bf16.mxu0 0
        %1189 = vmatpush2.bf16.xpose.msra.mxu0 0
        %1190 = vmatprep.mubr.bf16.mxu0 0
        %1191 = vmatmul.mubr.bf16.gmra.mxu0 %v1153
        %v1192 = vpop.f32.mrf.mxu0
        %v1193 = vadd.f32 %v873, %v1192
        %v1194 = vpop.f32.mrf.mxu0
        %v1195 = vpop.f32.mrf.mxu0
        %v1196 = vpop.f32.mrf.mxu0
        %1197 = vdwg.mxu0
        %v1198 = vsel %vm879, %v1143, -inf
        %1199 = vmax.xlane.f32.xlu0 %v1198
        %v1200 = vpop.xlane.xlu0 %1199
        %v1201 = vsel %vm879, %v1193, -inf
        %1202 = vmax.xlane.f32.xlu0 %v1201
        %v1203 = vpop.xlane.xlu0 %1202
        %v1204 = vsub.f32 %v1143, %v1200
        %v1205 = vsub.f32 %v1193, %v1203
        %v1206 = vmul.f32 %v1204, 1.442695
        %v1207 = vpow.pop %v1206
        %v1208 = vmul.f32 %v1205, 1.442695
        %v1209 = vpow.pop %v1208
        %v1210 = vsel %vm879, %v1207, 0.0
        %1211 = vadd.xlane.f32.xlu0 %v1210
        %v1212 = vpop.xlane.xlu0 %1211
        %v1213 = vsel %vm879, %v1209, 0.0
        %1214 = vadd.xlane.f32.xlu0 %v1213
        %v1215 = vpop.xlane.xlu0 %1214
        %v1216 = vrcp.pop %v1212
        %v1217 = vrcp.pop %v1215
        %v1218 = vmul.f32 %v1207, %v1216
        %v1219 = vmul.f32 %v1209, %v1217
        %v1220 = vpack.c.bf16 %v1218, %v1218
        %v1221 = vpack.c.bf16 %v1219, %v1219
        %1222 = vrot.lane.b32.xlu0 %v862, 56
        %v1223 = vpop.permute.xlu0 %1222
        %v1225 = vsel %vm879, %v1220, 0
        %v1228 = vsel %vm1004, %v1223, 0
        %1230 = vmatprep.subr.bf16.mxu0 0
        %1231 = vmatpush1.bf16.msra.mxu0 0
        %1232 = vmatprep.subr.bf16.mxu0 0
        %1233 = vmatpush1.bf16.msra.mxu0 0
        %1234 = vmatprep.subr.bf16.mxu0 0
        %1235 = vmatpush1.bf16.msra.mxu0 0
        %1236 = vmatprep.subr.bf16.mxu0 0
        %1237 = vmatpush1.bf16.msra.mxu0 0
        %1238 = vmatprep.subr.bf16.mxu0 0
        %1239 = vmatpush1.bf16.msra.mxu0 0
        %1240 = vmatprep.subr.bf16.mxu0 0
        %1241 = vmatpush1.bf16.msra.mxu0 0
        %1242 = vmatprep.subr.bf16.mxu0 0
        %1243 = vmatpush1.bf16.msra.mxu0 0
        %1244 = vmatprep.subr.bf16.mxu0 0
        %1245 = vmatpush1.bf16.msra.mxu0 %v1228
        %1246 = vmatprep.subr.bf16.mxu0 0
        %1247 = vmatpush2.bf16.msra.mxu0 0
        %1248 = vmatprep.subr.bf16.mxu0 0
        %1249 = vmatpush2.bf16.msra.mxu0 0
        %1250 = vmatprep.subr.bf16.mxu0 0
        %1251 = vmatpush2.bf16.msra.mxu0 0
        %1252 = vmatprep.subr.bf16.mxu0 0
        %1253 = vmatpush2.bf16.msra.mxu0 0
        %1254 = vmatprep.subr.bf16.mxu0 0
        %1255 = vmatpush2.bf16.msra.mxu0 0
        %1256 = vmatprep.subr.bf16.mxu0 0
        %1257 = vmatpush2.bf16.msra.mxu0 0
        %1258 = vmatprep.subr.bf16.mxu0 0
        %1259 = vmatpush2.bf16.msra.mxu0 0
        %1260 = vmatprep.subr.bf16.mxu0 0
        %1261 = vmatpush2.bf16.msra.mxu0 0
        %1262 = vmatprep.mubr.bf16.mxu0 0
        %1263 = vmatmul.mubr.bf16.gmra.mxu0 %v1225
        %v1264 = vpop.f32.mrf.mxu0
        %v1265 = vadd.f32 0.0, %v1264
        %v1266 = vpop.f32.mrf.mxu0
        %v1267 = vpop.f32.mrf.mxu0
        %v1268 = vpop.f32.mrf.mxu0
        %1269 = vdwg.mxu0
        %1270 = vrot.lane.b32.xlu0 %v863, 56
        %v1271 = vpop.permute.xlu0 %1270
        %v1273 = vsel %vm879, %v1221, 0
        %v1276 = vsel %vm1004, %v1271, 0
        %1278 = vmatprep.subr.bf16.mxu0 0
        %1279 = vmatpush1.bf16.msra.mxu0 0
        %1280 = vmatprep.subr.bf16.mxu0 0
        %1281 = vmatpush1.bf16.msra.mxu0 0
        %1282 = vmatprep.subr.bf16.mxu0 0
        %1283 = vmatpush1.bf16.msra.mxu0 0
        %1284 = vmatprep.subr.bf16.mxu0 0
        %1285 = vmatpush1.bf16.msra.mxu0 0
        %1286 = vmatprep.subr.bf16.mxu0 0
        %1287 = vmatpush1.bf16.msra.mxu0 0
        %1288 = vmatprep.subr.bf16.mxu0 0
        %1289 = vmatpush1.bf16.msra.mxu0 0
        %1290 = vmatprep.subr.bf16.mxu0 0
        %1291 = vmatpush1.bf16.msra.mxu0 0
        %1292 = vmatprep.subr.bf16.mxu0 0
        %1293 = vmatpush1.bf16.msra.mxu0 %v1276
        %1294 = vmatprep.subr.bf16.mxu0 0
        %1295 = vmatpush2.bf16.msra.mxu0 0
        %1296 = vmatprep.subr.bf16.mxu0 0
        %1297 = vmatpush2.bf16.msra.mxu0 0
        %1298 = vmatprep.subr.bf16.mxu0 0
        %1299 = vmatpush2.bf16.msra.mxu0 0
        %1300 = vmatprep.subr.bf16.mxu0 0
        %1301 = vmatpush2.bf16.msra.mxu0 0
        %1302 = vmatprep.subr.bf16.mxu0 0
        %1303 = vmatpush2.bf16.msra.mxu0 0
        %1304 = vmatprep.subr.bf16.mxu0 0
        %1305 = vmatpush2.bf16.msra.mxu0 0
        %1306 = vmatprep.subr.bf16.mxu0 0
        %1307 = vmatpush2.bf16.msra.mxu0 0
        %1308 = vmatprep.subr.bf16.mxu0 0
        %1309 = vmatpush2.bf16.msra.mxu0 0
        %1310 = vmatprep.mubr.bf16.mxu0 0
        %1311 = vmatmul.mubr.bf16.gmra.mxu0 %v1273
        %v1312 = vpop.f32.mrf.mxu0
        %v1313 = vadd.f32 0.0, %v1312
        %v1314 = vpop.f32.mrf.mxu0
        %v1315 = vpop.f32.mrf.mxu0
        %v1316 = vpop.f32.mrf.mxu0
        %1317 = vdwg.mxu0
        %1320 = vrot.lane.b32.xlu0 %v1265, 8
        %v1321 = vpop.permute.xlu0 %1320
        %1322 = vrot.lane.b32.xlu0 %v1313, 8
        %v1323 = vpop.permute.xlu0 %1322
        %vm1326 = vcmask 130112
        %1327 = vst.msk [vmem:[#allocation3] sm:$0xff] %vm1326, %v1321
        %1328 = vst.msk [vmem:[#allocation3 + $0x8] sm:$0xff] %vm1326, %v1323
        %1329 = vrot.lane.b32.xlu0 %v862, 112
        %v1330 = vpop.permute.xlu0 %1329
        %1331 = vrot.lane.b32.xlu0 %v862, 80
        %v1332 = vpop.permute.xlu0 %1331
        %v1334 = vsel %vm879, %v1330, 0
        %v1337 = vsel %vm879, %v1332, 0
        %1339 = vmatprep.subr.bf16.mxu0 0
        %1340 = vmatpush1.bf16.xpose.msra.mxu0 0
        %1341 = vmatprep.subr.bf16.mxu0 0
        %1342 = vmatpush1.bf16.xpose.msra.mxu0 0
        %1343 = vmatprep.subr.bf16.mxu0 0
        %1344 = vmatpush1.bf16.xpose.msra.mxu0 0
        %1345 = vmatprep.subr.bf16.mxu0 0
        %1346 = vmatpush1.bf16.xpose.msra.mxu0 0
        %1347 = vmatprep.subr.bf16.mxu0 0
        %1348 = vmatpush1.bf16.xpose.msra.mxu0 0
        %1349 = vmatprep.subr.bf16.mxu0 0
        %1350 = vmatpush1.bf16.xpose.msra.mxu0 0
        %1351 = vmatprep.subr.bf16.mxu0 0
        %1352 = vmatpush1.bf16.xpose.msra.mxu0 0
        %1353 = vmatprep.subr.bf16.mxu0 0
        %1354 = vmatpush1.bf16.xpose.msra.mxu0 %v1337
        %1355 = vmatprep.subr.bf16.mxu0 0
        %1356 = vmatpush2.bf16.xpose.msra.mxu0 0
        %1357 = vmatprep.subr.bf16.mxu0 0
        %1358 = vmatpush2.bf16.xpose.msra.mxu0 0
        %1359 = vmatprep.subr.bf16.mxu0 0
        %1360 = vmatpush2.bf16.xpose.msra.mxu0 0
        %1361 = vmatprep.subr.bf16.mxu0 0
        %1362 = vmatpush2.bf16.xpose.msra.mxu0 0
        %1363 = vmatprep.subr.bf16.mxu0 0
        %1364 = vmatpush2.bf16.xpose.msra.mxu0 0
        %1365 = vmatprep.subr.bf16.mxu0 0
        %1366 = vmatpush2.bf16.xpose.msra.mxu0 0
        %1367 = vmatprep.subr.bf16.mxu0 0
        %1368 = vmatpush2.bf16.xpose.msra.mxu0 0
        %1369 = vmatprep.subr.bf16.mxu0 0
        %1370 = vmatpush2.bf16.xpose.msra.mxu0 0
        %1371 = vmatprep.mubr.bf16.mxu0 0
        %1372 = vmatmul.mubr.bf16.gmra.mxu0 %v1334
        %v1373 = vpop.f32.mrf.mxu0
        %v1374 = vadd.f32 %v869, %v1373
        %v1375 = vpop.f32.mrf.mxu0
        %v1376 = vpop.f32.mrf.mxu0
        %v1377 = vpop.f32.mrf.mxu0
        %1378 = vdwg.mxu0
        %1379 = vrot.lane.b32.xlu0 %v863, 112
        %v1380 = vpop.permute.xlu0 %1379
        %1381 = vrot.lane.b32.xlu0 %v863, 80
        %v1382 = vpop.permute.xlu0 %1381
        %v1384 = vsel %vm879, %v1380, 0
        %v1387 = vsel %vm879, %v1382, 0
        %1389 = vmatprep.subr.bf16.mxu0 0
        %1390 = vmatpush1.bf16.xpose.msra.mxu0 0
        %1391 = vmatprep.subr.bf16.mxu0 0
        %1392 = vmatpush1.bf16.xpose.msra.mxu0 0
        %1393 = vmatprep.subr.bf16.mxu0 0
        %1394 = vmatpush1.bf16.xpose.msra.mxu0 0
        %1395 = vmatprep.subr.bf16.mxu0 0
        %1396 = vmatpush1.bf16.xpose.msra.mxu0 0
        %1397 = vmatprep.subr.bf16.mxu0 0
        %1398 = vmatpush1.bf16.xpose.msra.mxu0 0
        %1399 = vmatprep.subr.bf16.mxu0 0
        %1400 = vmatpush1.bf16.xpose.msra.mxu0 0
        %1401 = vmatprep.subr.bf16.mxu0 0
        %1402 = vmatpush1.bf16.xpose.msra.mxu0 0
        %1403 = vmatprep.subr.bf16.mxu0 0
        %1404 = vmatpush1.bf16.xpose.msra.mxu0 %v1387
        %1405 = vmatprep.subr.bf16.mxu0 0
        %1406 = vmatpush2.bf16.xpose.msra.mxu0 0
        %1407 = vmatprep.subr.bf16.mxu0 0
        %1408 = vmatpush2.bf16.xpose.msra.mxu0 0
        %1409 = vmatprep.subr.bf16.mxu0 0
        %1410 = vmatpush2.bf16.xpose.msra.mxu0 0
        %1411 = vmatprep.subr.bf16.mxu0 0
        %1412 = vmatpush2.bf16.xpose.msra.mxu0 0
        %1413 = vmatprep.subr.bf16.mxu0 0
        %1414 = vmatpush2.bf16.xpose.msra.mxu0 0
        %1415 = vmatprep.subr.bf16.mxu0 0
        %1416 = vmatpush2.bf16.xpose.msra.mxu0 0
        %1417 = vmatprep.subr.bf16.mxu0 0
        %1418 = vmatpush2.bf16.xpose.msra.mxu0 0
        %1419 = vmatprep.subr.bf16.mxu0 0
        %1420 = vmatpush2.bf16.xpose.msra.mxu0 0
        %1421 = vmatprep.mubr.bf16.mxu0 0
        %1422 = vmatmul.mubr.bf16.gmra.mxu0 %v1384
        %v1423 = vpop.f32.mrf.mxu0
        %v1424 = vadd.f32 %v873, %v1423
        %v1425 = vpop.f32.mrf.mxu0
        %v1426 = vpop.f32.mrf.mxu0
        %v1427 = vpop.f32.mrf.mxu0
        %1428 = vdwg.mxu0
        %v1429 = vsel %vm879, %v1374, -inf
        %1430 = vmax.xlane.f32.xlu0 %v1429
        %v1431 = vpop.xlane.xlu0 %1430
        %v1432 = vsel %vm879, %v1424, -inf
        %1433 = vmax.xlane.f32.xlu0 %v1432
        %v1434 = vpop.xlane.xlu0 %1433
        %v1435 = vsub.f32 %v1374, %v1431
        %v1436 = vsub.f32 %v1424, %v1434
        %v1437 = vmul.f32 %v1435, 1.442695
        %v1438 = vpow.pop %v1437
        %v1439 = vmul.f32 %v1436, 1.442695
        %v1440 = vpow.pop %v1439
        %v1441 = vsel %vm879, %v1438, 0.0
        %1442 = vadd.xlane.f32.xlu0 %v1441
        %v1443 = vpop.xlane.xlu0 %1442
        %v1444 = vsel %vm879, %v1440, 0.0
        %1445 = vadd.xlane.f32.xlu0 %v1444
        %v1446 = vpop.xlane.xlu0 %1445
        %v1447 = vrcp.pop %v1443
        %v1448 = vrcp.pop %v1446
        %v1449 = vmul.f32 %v1438, %v1447
        %v1450 = vmul.f32 %v1440, %v1448
        %v1451 = vpack.c.bf16 %v1449, %v1449
        %v1452 = vpack.c.bf16 %v1450, %v1450
        %1453 = vrot.lane.b32.xlu0 %v862, 48
        %v1454 = vpop.permute.xlu0 %1453
        %v1456 = vsel %vm879, %v1451, 0
        %v1459 = vsel %vm1004, %v1454, 0
        %1461 = vmatprep.subr.bf16.mxu0 0
        %1462 = vmatpush1.bf16.msra.mxu0 0
        %1463 = vmatprep.subr.bf16.mxu0 0
        %1464 = vmatpush1.bf16.msra.mxu0 0
        %1465 = vmatprep.subr.bf16.mxu0 0
        %1466 = vmatpush1.bf16.msra.mxu0 0
        %1467 = vmatprep.subr.bf16.mxu0 0
        %1468 = vmatpush1.bf16.msra.mxu0 0
        %1469 = vmatprep.subr.bf16.mxu0 0
        %1470 = vmatpush1.bf16.msra.mxu0 0
        %1471 = vmatprep.subr.bf16.mxu0 0
        %1472 = vmatpush1.bf16.msra.mxu0 0
        %1473 = vmatprep.subr.bf16.mxu0 0
        %1474 = vmatpush1.bf16.msra.mxu0 0
        %1475 = vmatprep.subr.bf16.mxu0 0
        %1476 = vmatpush1.bf16.msra.mxu0 %v1459
        %1477 = vmatprep.subr.bf16.mxu0 0
        %1478 = vmatpush2.bf16.msra.mxu0 0
        %1479 = vmatprep.subr.bf16.mxu0 0
        %1480 = vmatpush2.bf16.msra.mxu0 0
        %1481 = vmatprep.subr.bf16.mxu0 0
        %1482 = vmatpush2.bf16.msra.mxu0 0
        %1483 = vmatprep.subr.bf16.mxu0 0
        %1484 = vmatpush2.bf16.msra.mxu0 0
        %1485 = vmatprep.subr.bf16.mxu0 0
        %1486 = vmatpush2.bf16.msra.mxu0 0
        %1487 = vmatprep.subr.bf16.mxu0 0
        %1488 = vmatpush2.bf16.msra.mxu0 0
        %1489 = vmatprep.subr.bf16.mxu0 0
        %1490 = vmatpush2.bf16.msra.mxu0 0
        %1491 = vmatprep.subr.bf16.mxu0 0
        %1492 = vmatpush2.bf16.msra.mxu0 0
        %1493 = vmatprep.mubr.bf16.mxu0 0
        %1494 = vmatmul.mubr.bf16.gmra.mxu0 %v1456
        %v1495 = vpop.f32.mrf.mxu0
        %v1496 = vadd.f32 0.0, %v1495
        %v1497 = vpop.f32.mrf.mxu0
        %v1498 = vpop.f32.mrf.mxu0
        %v1499 = vpop.f32.mrf.mxu0
        %1500 = vdwg.mxu0
        %1501 = vrot.lane.b32.xlu0 %v863, 48
        %v1502 = vpop.permute.xlu0 %1501
        %v1504 = vsel %vm879, %v1452, 0
        %v1507 = vsel %vm1004, %v1502, 0
        %1509 = vmatprep.subr.bf16.mxu0 0
        %1510 = vmatpush1.bf16.msra.mxu0 0
        %1511 = vmatprep.subr.bf16.mxu0 0
        %1512 = vmatpush1.bf16.msra.mxu0 0
        %1513 = vmatprep.subr.bf16.mxu0 0
        %1514 = vmatpush1.bf16.msra.mxu0 0
        %1515 = vmatprep.subr.bf16.mxu0 0
        %1516 = vmatpush1.bf16.msra.mxu0 0
        %1517 = vmatprep.subr.bf16.mxu0 0
        %1518 = vmatpush1.bf16.msra.mxu0 0
        %1519 = vmatprep.subr.bf16.mxu0 0
        %1520 = vmatpush1.bf16.msra.mxu0 0
        %1521 = vmatprep.subr.bf16.mxu0 0
        %1522 = vmatpush1.bf16.msra.mxu0 0
        %1523 = vmatprep.subr.bf16.mxu0 0
        %1524 = vmatpush1.bf16.msra.mxu0 %v1507
        %1525 = vmatprep.subr.bf16.mxu0 0
        %1526 = vmatpush2.bf16.msra.mxu0 0
        %1527 = vmatprep.subr.bf16.mxu0 0
        %1528 = vmatpush2.bf16.msra.mxu0 0
        %1529 = vmatprep.subr.bf16.mxu0 0
        %1530 = vmatpush2.bf16.msra.mxu0 0
        %1531 = vmatprep.subr.bf16.mxu0 0
        %1532 = vmatpush2.bf16.msra.mxu0 0
        %1533 = vmatprep.subr.bf16.mxu0 0
        %1534 = vmatpush2.bf16.msra.mxu0 0
        %1535 = vmatprep.subr.bf16.mxu0 0
        %1536 = vmatpush2.bf16.msra.mxu0 0
        %1537 = vmatprep.subr.bf16.mxu0 0
        %1538 = vmatpush2.bf16.msra.mxu0 0
        %1539 = vmatprep.subr.bf16.mxu0 0
        %1540 = vmatpush2.bf16.msra.mxu0 0
        %1541 = vmatprep.mubr.bf16.mxu0 0
        %1542 = vmatmul.mubr.bf16.gmra.mxu0 %v1504
        %v1543 = vpop.f32.mrf.mxu0
        %v1544 = vadd.f32 0.0, %v1543
        %v1545 = vpop.f32.mrf.mxu0
        %v1546 = vpop.f32.mrf.mxu0
        %v1547 = vpop.f32.mrf.mxu0
        %1548 = vdwg.mxu0
        %1551 = vrot.lane.b32.xlu0 %v1496, 16
        %v1552 = vpop.permute.xlu0 %1551
        %1553 = vrot.lane.b32.xlu0 %v1544, 16
        %v1554 = vpop.permute.xlu0 %1553
        %vm1557 = vcmask 195712
        %1558 = vst.msk [vmem:[#allocation3] sm:$0xff] %vm1557, %v1552
        %1559 = vst.msk [vmem:[#allocation3 + $0x8] sm:$0xff] %vm1557, %v1554
        %1560 = vrot.lane.b32.xlu0 %v862, 104
        %v1561 = vpop.permute.xlu0 %1560
        %1562 = vrot.lane.b32.xlu0 %v862, 72
        %v1563 = vpop.permute.xlu0 %1562
        %v1565 = vsel %vm879, %v1561, 0
        %v1568 = vsel %vm879, %v1563, 0
        %1570 = vmatprep.subr.bf16.mxu0 0
        %1571 = vmatpush1.bf16.xpose.msra.mxu0 0
        %1572 = vmatprep.subr.bf16.mxu0 0
        %1573 = vmatpush1.bf16.xpose.msra.mxu0 0
        %1574 = vmatprep.subr.bf16.mxu0 0
        %1575 = vmatpush1.bf16.xpose.msra.mxu0 0
        %1576 = vmatprep.subr.bf16.mxu0 0
        %1577 = vmatpush1.bf16.xpose.msra.mxu0 0
        %1578 = vmatprep.subr.bf16.mxu0 0
        %1579 = vmatpush1.bf16.xpose.msra.mxu0 0
        %1580 = vmatprep.subr.bf16.mxu0 0
        %1581 = vmatpush1.bf16.xpose.msra.mxu0 0
        %1582 = vmatprep.subr.bf16.mxu0 0
        %1583 = vmatpush1.bf16.xpose.msra.mxu0 0
        %1584 = vmatprep.subr.bf16.mxu0 0
        %1585 = vmatpush1.bf16.xpose.msra.mxu0 %v1568
        %1586 = vmatprep.subr.bf16.mxu0 0
        %1587 = vmatpush2.bf16.xpose.msra.mxu0 0
        %1588 = vmatprep.subr.bf16.mxu0 0
        %1589 = vmatpush2.bf16.xpose.msra.mxu0 0
        %1590 = vmatprep.subr.bf16.mxu0 0
        %1591 = vmatpush2.bf16.xpose.msra.mxu0 0
        %1592 = vmatprep.subr.bf16.mxu0 0
        %1593 = vmatpush2.bf16.xpose.msra.mxu0 0
        %1594 = vmatprep.subr.bf16.mxu0 0
        %1595 = vmatpush2.bf16.xpose.msra.mxu0 0
        %1596 = vmatprep.subr.bf16.mxu0 0
        %1597 = vmatpush2.bf16.xpose.msra.mxu0 0
        %1598 = vmatprep.subr.bf16.mxu0 0
        %1599 = vmatpush2.bf16.xpose.msra.mxu0 0
        %1600 = vmatprep.subr.bf16.mxu0 0
        %1601 = vmatpush2.bf16.xpose.msra.mxu0 0
        %1602 = vmatprep.mubr.bf16.mxu0 0
        %1603 = vmatmul.mubr.bf16.gmra.mxu0 %v1565
        %v1604 = vpop.f32.mrf.mxu0
        %v1605 = vadd.f32 %v869, %v1604
        %v1606 = vpop.f32.mrf.mxu0
        %v1607 = vpop.f32.mrf.mxu0
        %v1608 = vpop.f32.mrf.mxu0
        %1609 = vdwg.mxu0
        %1610 = vrot.lane.b32.xlu0 %v863, 104
        %v1611 = vpop.permute.xlu0 %1610
        %1612 = vrot.lane.b32.xlu0 %v863, 72
        %v1613 = vpop.permute.xlu0 %1612
        %v1615 = vsel %vm879, %v1611, 0
        %v1618 = vsel %vm879, %v1613, 0
        %1620 = vmatprep.subr.bf16.mxu0 0
        %1621 = vmatpush1.bf16.xpose.msra.mxu0 0
        %1622 = vmatprep.subr.bf16.mxu0 0
        %1623 = vmatpush1.bf16.xpose.msra.mxu0 0
        %1624 = vmatprep.subr.bf16.mxu0 0
        %1625 = vmatpush1.bf16.xpose.msra.mxu0 0
        %1626 = vmatprep.subr.bf16.mxu0 0
        %1627 = vmatpush1.bf16.xpose.msra.mxu0 0
        %1628 = vmatprep.subr.bf16.mxu0 0
        %1629 = vmatpush1.bf16.xpose.msra.mxu0 0
        %1630 = vmatprep.subr.bf16.mxu0 0
        %1631 = vmatpush1.bf16.xpose.msra.mxu0 0
        %1632 = vmatprep.subr.bf16.mxu0 0
        %1633 = vmatpush1.bf16.xpose.msra.mxu0 0
        %1634 = vmatprep.subr.bf16.mxu0 0
        %1635 = vmatpush1.bf16.xpose.msra.mxu0 %v1618
        %1636 = vmatprep.subr.bf16.mxu0 0
        %1637 = vmatpush2.bf16.xpose.msra.mxu0 0
        %1638 = vmatprep.subr.bf16.mxu0 0
        %1639 = vmatpush2.bf16.xpose.msra.mxu0 0
        %1640 = vmatprep.subr.bf16.mxu0 0
        %1641 = vmatpush2.bf16.xpose.msra.mxu0 0
        %1642 = vmatprep.subr.bf16.mxu0 0
        %1643 = vmatpush2.bf16.xpose.msra.mxu0 0
        %1644 = vmatprep.subr.bf16.mxu0 0
        %1645 = vmatpush2.bf16.xpose.msra.mxu0 0
        %1646 = vmatprep.subr.bf16.mxu0 0
        %1647 = vmatpush2.bf16.xpose.msra.mxu0 0
        %1648 = vmatprep.subr.bf16.mxu0 0
        %1649 = vmatpush2.bf16.xpose.msra.mxu0 0
        %1650 = vmatprep.subr.bf16.mxu0 0
        %1651 = vmatpush2.bf16.xpose.msra.mxu0 0
        %1652 = vmatprep.mubr.bf16.mxu0 0
        %1653 = vmatmul.mubr.bf16.gmra.mxu0 %v1615
        %v1654 = vpop.f32.mrf.mxu0
        %v1655 = vadd.f32 %v873, %v1654
        %v1656 = vpop.f32.mrf.mxu0
        %v1657 = vpop.f32.mrf.mxu0
        %v1658 = vpop.f32.mrf.mxu0
        %1659 = vdwg.mxu0
        %v1660 = vsel %vm879, %v1605, -inf
        %1661 = vmax.xlane.f32.xlu0 %v1660
        %v1662 = vpop.xlane.xlu0 %1661
        %v1663 = vsel %vm879, %v1655, -inf
        %1664 = vmax.xlane.f32.xlu0 %v1663
        %v1665 = vpop.xlane.xlu0 %1664
        %v1666 = vsub.f32 %v1605, %v1662
        %v1667 = vsub.f32 %v1655, %v1665
        %v1668 = vmul.f32 %v1666, 1.442695
        %v1669 = vpow.pop %v1668
        %v1670 = vmul.f32 %v1667, 1.442695
        %v1671 = vpow.pop %v1670
        %v1672 = vsel %vm879, %v1669, 0.0
        %1673 = vadd.xlane.f32.xlu0 %v1672
        %v1674 = vpop.xlane.xlu0 %1673
        %v1675 = vsel %vm879, %v1671, 0.0
        %1676 = vadd.xlane.f32.xlu0 %v1675
        %v1677 = vpop.xlane.xlu0 %1676
        %v1678 = vrcp.pop %v1674
        %v1679 = vrcp.pop %v1677
        %v1680 = vmul.f32 %v1669, %v1678
        %v1681 = vmul.f32 %v1671, %v1679
        %v1682 = vpack.c.bf16 %v1680, %v1680
        %v1683 = vpack.c.bf16 %v1681, %v1681
        %1684 = vrot.lane.b32.xlu0 %v862, 40
        %v1685 = vpop.permute.xlu0 %1684
        %v1687 = vsel %vm879, %v1682, 0
        %v1690 = vsel %vm1004, %v1685, 0
        %1692 = vmatprep.subr.bf16.mxu0 0
        %1693 = vmatpush1.bf16.msra.mxu0 0
        %1694 = vmatprep.subr.bf16.mxu0 0
        %1695 = vmatpush1.bf16.msra.mxu0 0
        %1696 = vmatprep.subr.bf16.mxu0 0
        %1697 = vmatpush1.bf16.msra.mxu0 0
        %1698 = vmatprep.subr.bf16.mxu0 0
        %1699 = vmatpush1.bf16.msra.mxu0 0
        %1700 = vmatprep.subr.bf16.mxu0 0
        %1701 = vmatpush1.bf16.msra.mxu0 0
        %1702 = vmatprep.subr.bf16.mxu0 0
        %1703 = vmatpush1.bf16.msra.mxu0 0
        %1704 = vmatprep.subr.bf16.mxu0 0
        %1705 = vmatpush1.bf16.msra.mxu0 0
        %1706 = vmatprep.subr.bf16.mxu0 0
        %1707 = vmatpush1.bf16.msra.mxu0 %v1690
        %1708 = vmatprep.subr.bf16.mxu0 0
        %1709 = vmatpush2.bf16.msra.mxu0 0
        %1710 = vmatprep.subr.bf16.mxu0 0
        %1711 = vmatpush2.bf16.msra.mxu0 0
        %1712 = vmatprep.subr.bf16.mxu0 0
        %1713 = vmatpush2.bf16.msra.mxu0 0
        %1714 = vmatprep.subr.bf16.mxu0 0
        %1715 = vmatpush2.bf16.msra.mxu0 0
        %1716 = vmatprep.subr.bf16.mxu0 0
        %1717 = vmatpush2.bf16.msra.mxu0 0
        %1718 = vmatprep.subr.bf16.mxu0 0
        %1719 = vmatpush2.bf16.msra.mxu0 0
        %1720 = vmatprep.subr.bf16.mxu0 0
        %1721 = vmatpush2.bf16.msra.mxu0 0
        %1722 = vmatprep.subr.bf16.mxu0 0
        %1723 = vmatpush2.bf16.msra.mxu0 0
        %1724 = vmatprep.mubr.bf16.mxu0 0
        %1725 = vmatmul.mubr.bf16.gmra.mxu0 %v1687
        %v1726 = vpop.f32.mrf.mxu0
        %v1727 = vadd.f32 0.0, %v1726
        %v1728 = vpop.f32.mrf.mxu0
        %v1729 = vpop.f32.mrf.mxu0
        %v1730 = vpop.f32.mrf.mxu0
        %1731 = vdwg.mxu0
        %1732 = vrot.lane.b32.xlu0 %v863, 40
        %v1733 = vpop.permute.xlu0 %1732
        %v1735 = vsel %vm879, %v1683, 0
        %v1738 = vsel %vm1004, %v1733, 0
        %1740 = vmatprep.subr.bf16.mxu0 0
        %1741 = vmatpush1.bf16.msra.mxu0 0
        %1742 = vmatprep.subr.bf16.mxu0 0
        %1743 = vmatpush1.bf16.msra.mxu0 0
        %1744 = vmatprep.subr.bf16.mxu0 0
        %1745 = vmatpush1.bf16.msra.mxu0 0
        %1746 = vmatprep.subr.bf16.mxu0 0
        %1747 = vmatpush1.bf16.msra.mxu0 0
        %1748 = vmatprep.subr.bf16.mxu0 0
        %1749 = vmatpush1.bf16.msra.mxu0 0
        %1750 = vmatprep.subr.bf16.mxu0 0
        %1751 = vmatpush1.bf16.msra.mxu0 0
        %1752 = vmatprep.subr.bf16.mxu0 0
        %1753 = vmatpush1.bf16.msra.mxu0 0
        %1754 = vmatprep.subr.bf16.mxu0 0
        %1755 = vmatpush1.bf16.msra.mxu0 %v1738
        %1756 = vmatprep.subr.bf16.mxu0 0
        %1757 = vmatpush2.bf16.msra.mxu0 0
        %1758 = vmatprep.subr.bf16.mxu0 0
        %1759 = vmatpush2.bf16.msra.mxu0 0
        %1760 = vmatprep.subr.bf16.mxu0 0
        %1761 = vmatpush2.bf16.msra.mxu0 0
        %1762 = vmatprep.subr.bf16.mxu0 0
        %1763 = vmatpush2.bf16.msra.mxu0 0
        %1764 = vmatprep.subr.bf16.mxu0 0
        %1765 = vmatpush2.bf16.msra.mxu0 0
        %1766 = vmatprep.subr.bf16.mxu0 0
        %1767 = vmatpush2.bf16.msra.mxu0 0
        %1768 = vmatprep.subr.bf16.mxu0 0
        %1769 = vmatpush2.bf16.msra.mxu0 0
        %1770 = vmatprep.subr.bf16.mxu0 0
        %1771 = vmatpush2.bf16.msra.mxu0 0
        %1772 = vmatprep.mubr.bf16.mxu0 0
        %1773 = vmatmul.mubr.bf16.gmra.mxu0 %v1735
        %v1774 = vpop.f32.mrf.mxu0
        %v1775 = vadd.f32 0.0, %v1774
        %v1776 = vpop.f32.mrf.mxu0
        %v1777 = vpop.f32.mrf.mxu0
        %v1778 = vpop.f32.mrf.mxu0
        %1779 = vdwg.mxu0
        %1782 = vrot.lane.b32.xlu0 %v1727, 24
        %v1783 = vpop.permute.xlu0 %1782
        %1784 = vrot.lane.b32.xlu0 %v1775, 24
        %v1785 = vpop.permute.xlu0 %1784
        %vm1788 = vcmask 261312
        %1789 = vst.msk [vmem:[#allocation3] sm:$0xff] %vm1788, %v1783
        %1790 = vst.msk [vmem:[#allocation3 + $0x8] sm:$0xff] %vm1788, %v1785
        %v1791 = vld [vmem:[#allocation3] sm:$0xff]
        %v1792 = vld [vmem:[#allocation3 + $0x8] sm:$0xff]
        %v1793 = vpack.c.bf16 %v1792, %v1791
        %v1794 = vld [vmem:[%s702] sm:$0xf]
        %v1795 = vld [vmem:[%s702 + $0x4] sm:$0xf]
        %v1796 = vld [vmem:[%s702 + $0x8] sm:$0xf]
        %v1797 = vld [vmem:[%s702 + $0xc] sm:$0xf]
        %v1798 = vld [vmem:[%s705] sm:$0x1]
        %v1800 = vlaneseq
        %v1801 = vshrl.u32 %v1800, 7
        %v1802 = vsub.s32 0, %v1801
        %v1803 = vrot.slane %v1798, %v1802
        %v1809 = vunpack.c.l.b16 %v1794
        %v1810 = vunpack.c.l.b16 %v1795
        %v1811 = vunpack.c.l.b16 %v1796
        %v1812 = vunpack.c.l.b16 %v1797
        %v1813 = vpack.c.b16 %v1810, %v1809
        %v1814 = vpack.c.b16 %v1812, %v1811
        %v1818 = vsel %vm815, %v1793, 0
        %1820 = vmatprep.subr.bf16.mxu0 0
        %1821 = vmatpush1.bf16.msra.mxu0 0
        %1822 = vmatprep.subr.bf16.mxu0 0
        %1823 = vmatpush1.bf16.msra.mxu0 0
        %1824 = vmatprep.subr.bf16.mxu0 0
        %1825 = vmatpush1.bf16.msra.mxu0 0
        %1826 = vmatprep.subr.bf16.mxu0 0
        %1827 = vmatpush1.bf16.msra.mxu0 0
        %1828 = vmatprep.subr.bf16.mxu0 0
        %1829 = vmatpush1.bf16.msra.mxu0 0
        %1830 = vmatprep.subr.bf16.mxu0 0
        %1831 = vmatpush1.bf16.msra.mxu0 0
        %1832 = vmatprep.subr.bf16.mxu0 0
        %1833 = vmatpush1.bf16.msra.mxu0 %v1814
        %1834 = vmatprep.subr.bf16.mxu0 0
        %1835 = vmatpush1.bf16.msra.mxu0 %v1813
        %1836 = vmatprep.subr.bf16.mxu0 0
        %1837 = vmatpush2.bf16.msra.mxu0 0
        %1838 = vmatprep.subr.bf16.mxu0 0
        %1839 = vmatpush2.bf16.msra.mxu0 0
        %1840 = vmatprep.subr.bf16.mxu0 0
        %1841 = vmatpush2.bf16.msra.mxu0 0
        %1842 = vmatprep.subr.bf16.mxu0 0
        %1843 = vmatpush2.bf16.msra.mxu0 0
        %1844 = vmatprep.subr.bf16.mxu0 0
        %1845 = vmatpush2.bf16.msra.mxu0 0
        %1846 = vmatprep.subr.bf16.mxu0 0
        %1847 = vmatpush2.bf16.msra.mxu0 0
        %1848 = vmatprep.subr.bf16.mxu0 0
        %1849 = vmatpush2.bf16.msra.mxu0 0
        %1850 = vmatprep.subr.bf16.mxu0 0
        %1851 = vmatpush2.bf16.msra.mxu0 0
        %1852 = vmatprep.mubr.bf16.mxu0 0
        %1853 = vmatmul.mubr.bf16.gmra.mxu0 %v1818
        %v1854 = vpop.f32.mrf.mxu0
        %v1855 = vadd.f32 %v1803, %v1854
        %v1856 = vpop.f32.mrf.mxu0
        %v1857 = vpop.f32.mrf.mxu0
        %v1858 = vadd.f32 %v1803, %v1857
        %v1859 = vpop.f32.mrf.mxu0
        %1860 = vdwg.mxu0
        %v1861 = vadd.f32 %v1855, %v789
        %v1862 = vadd.f32 %v1858, %v790
        %v1863 = vld [vmem:[%s708] sm:$0x1]
        %v1864 = vld [vmem:[%s711] sm:$0x1]
        %v1865 = vsel %vm815, %v1861, 0.0
        %1866 = vadd.xlane.f32.xlu0 %v1865
        %v1867 = vpop.xlane.xlu0 %1866
        %v1868 = vsel %vm815, %v1862, 0.0
        %1869 = vadd.xlane.f32.xlu0 %v1868
        %v1870 = vpop.xlane.xlu0 %1869
        %v1871 = vrcp.pop 32.0
        %v1872 = vmul.f32 %v1867, %v1871
        %v1873 = vmul.f32 %v1870, %v1871
        %v1874 = vsub.f32 %v1861, %v1872
        %v1875 = vsub.f32 %v1862, %v1873
        %v1876 = vmul.f32 %v1874, %v1874
        %v1877 = vmul.f32 %v1875, %v1875
        %v1878 = vsel %vm815, %v1876, 0.0
        %1879 = vadd.xlane.f32.xlu0 %v1878
        %v1880 = vpop.xlane.xlu0 %1879
        %v1881 = vsel %vm815, %v1877, 0.0
        %1882 = vadd.xlane.f32.xlu0 %v1881
        %v1883 = vpop.xlane.xlu0 %1882
        %v1884 = vmul.f32 %v1880, %v1871
        %v1885 = vmul.f32 %v1883, %v1871
        %v1886 = vadd.f32 %v1884, 1e-12
        %v1887 = vadd.f32 %v1885, 1e-12
        %v1888 = vrsqrt.pop %v1886
        %v1889 = vrsqrt.pop %v1887
        %v1890 = vmul.f32 %v1874, %v1888
        %v1891 = vmul.f32 %v1875, %v1889
        %v1893 = vlaneseq
        %v1894 = vshrl.u32 %v1893, 7
        %v1895 = vsub.s32 0, %v1894
        %v1896 = vrot.slane %v1863, %v1895
        %v1898 = vmul.f32 %v1890, %v1896
        %v1899 = vmul.f32 %v1891, %v1896
        %v1901 = vlaneseq
        %v1902 = vshrl.u32 %v1901, 7
        %v1903 = vsub.s32 0, %v1902
        %v1904 = vrot.slane %v1864, %v1903
        %v1906 = vadd.f32 %v1898, %v1904
        %v1907 = vadd.f32 %v1899, %v1904
        %v1908 = vpack.c.bf16 %v1907, %v1906
        %v1909 = vld [vmem:[%s716] sm:$0xf]
        %v1910 = vld [vmem:[%s716 + $0x4] sm:$0xf]
        %v1911 = vld [vmem:[%s716 + $0x8] sm:$0xf]
        %v1912 = vld [vmem:[%s716 + $0xc] sm:$0xf]
        %v1913 = vld [vmem:[%s719] sm:$0x1]
        %v1915 = vlaneseq
        %v1916 = vshrl.u32 %v1915, 7
        %v1917 = vsub.s32 0, %v1916
        %v1918 = vrot.slane %v1913, %v1917
        %v1924 = vunpack.c.l.b16 %v1909
        %v1925 = vunpack.c.l.b16 %v1910
        %v1926 = vunpack.c.l.b16 %v1911
        %v1927 = vunpack.c.l.b16 %v1912
        %v1928 = vpack.c.b16 %v1925, %v1924
        %v1929 = vpack.c.b16 %v1927, %v1926
        %v1933 = vsel %vm815, %v1908, 0
        %1935 = vmatprep.subr.bf16.mxu0 0
        %1936 = vmatpush1.bf16.msra.mxu0 0
        %1937 = vmatprep.subr.bf16.mxu0 0
        %1938 = vmatpush1.bf16.msra.mxu0 0
        %1939 = vmatprep.subr.bf16.mxu0 0
        %1940 = vmatpush1.bf16.msra.mxu0 0
        %1941 = vmatprep.subr.bf16.mxu0 0
        %1942 = vmatpush1.bf16.msra.mxu0 0
        %1943 = vmatprep.subr.bf16.mxu0 0
        %1944 = vmatpush1.bf16.msra.mxu0 0
        %1945 = vmatprep.subr.bf16.mxu0 0
        %1946 = vmatpush1.bf16.msra.mxu0 0
        %1947 = vmatprep.subr.bf16.mxu0 0
        %1948 = vmatpush1.bf16.msra.mxu0 %v1929
        %1949 = vmatprep.subr.bf16.mxu0 0
        %1950 = vmatpush1.bf16.msra.mxu0 %v1928
        %1951 = vmatprep.subr.bf16.mxu0 0
        %1952 = vmatpush2.bf16.msra.mxu0 0
        %1953 = vmatprep.subr.bf16.mxu0 0
        %1954 = vmatpush2.bf16.msra.mxu0 0
        %1955 = vmatprep.subr.bf16.mxu0 0
        %1956 = vmatpush2.bf16.msra.mxu0 0
        %1957 = vmatprep.subr.bf16.mxu0 0
        %1958 = vmatpush2.bf16.msra.mxu0 0
        %1959 = vmatprep.subr.bf16.mxu0 0
        %1960 = vmatpush2.bf16.msra.mxu0 0
        %1961 = vmatprep.subr.bf16.mxu0 0
        %1962 = vmatpush2.bf16.msra.mxu0 0
        %1963 = vmatprep.subr.bf16.mxu0 0
        %1964 = vmatpush2.bf16.msra.mxu0 0
        %1965 = vmatprep.subr.bf16.mxu0 0
        %1966 = vmatpush2.bf16.msra.mxu0 0
        %1967 = vmatprep.mubr.bf16.mxu0 0
        %1968 = vmatmul.mubr.bf16.gmra.mxu0 %v1933
        %v1969 = vpop.f32.mrf.mxu0
        %v1970 = vadd.f32 %v1918, %v1969
        %v1971 = vpop.f32.mrf.mxu0
        %v1972 = vpop.f32.mrf.mxu0
        %v1973 = vadd.f32 %v1918, %v1972
        %v1974 = vpop.f32.mrf.mxu0
        %1975 = vdwg.mxu0
        %v1976 = vmul.f32 %v1970, 0.5
        %v1977 = vmul.f32 %v1973, 0.5
        %v1978 = vmul.f32 %v1970, 0.70710677
        %v1979 = vmul.f32 %v1973, 0.70710677
        %v1980 = verf.f32.pop %v1978
        %v1981 = verf.f32.pop %v1979
        %v1982 = vadd.f32 %v1980, 1.0
        %v1983 = vadd.f32 %v1981, 1.0
        %v1984 = vmul.f32 %v1976, %v1982
        %v1985 = vmul.f32 %v1977, %v1983
        %v1986 = vpack.c.bf16 %v1985, %v1984
        %v1987 = vld [vmem:[%s724] sm:$0xf]
        %v1988 = vld [vmem:[%s724 + $0x4] sm:$0xf]
        %v1989 = vld [vmem:[%s724 + $0x8] sm:$0xf]
        %v1990 = vld [vmem:[%s724 + $0xc] sm:$0xf]
        %v1991 = vld [vmem:[%s724 + $0x10] sm:$0xf]
        %v1992 = vld [vmem:[%s724 + $0x14] sm:$0xf]
        %v1993 = vld [vmem:[%s724 + $0x18] sm:$0xf]
        %v1994 = vld [vmem:[%s724 + $0x1c] sm:$0xf]
        %v1995 = vld [vmem:[%s727] sm:$0x1]
        %v1997 = vlaneseq
        %v1998 = vshrl.u32 %v1997, 7
        %v1999 = vsub.s32 0, %v1998
        %v2000 = vrot.slane %v1995, %v1999
        %v2010 = vunpack.c.l.b16 %v1987
        %v2011 = vunpack.c.l.b16 %v1988
        %v2012 = vunpack.c.l.b16 %v1989
        %v2013 = vunpack.c.l.b16 %v1990
        %v2014 = vunpack.c.l.b16 %v1991
        %v2015 = vunpack.c.l.b16 %v1992
        %v2016 = vunpack.c.l.b16 %v1993
        %v2017 = vunpack.c.l.b16 %v1994
        %v2018 = vpack.c.b16 %v2011, %v2010
        %v2019 = vpack.c.b16 %v2013, %v2012
        %v2020 = vpack.c.b16 %v2015, %v2014
        %v2021 = vpack.c.b16 %v2017, %v2016
        %vm2026 = vcmask 523264
        %v2028 = vsel %vm2026, %v1986, 0
        %2030 = vmatprep.subr.bf16.mxu0 0
        %2031 = vmatpush1.bf16.msra.mxu0 0
        %2032 = vmatprep.subr.bf16.mxu0 0
        %2033 = vmatpush1.bf16.msra.mxu0 0
        %2034 = vmatprep.subr.bf16.mxu0 0
        %2035 = vmatpush1.bf16.msra.mxu0 0
        %2036 = vmatprep.subr.bf16.mxu0 0
        %2037 = vmatpush1.bf16.msra.mxu0 0
        %2038 = vmatprep.subr.bf16.mxu0 0
        %2039 = vmatpush1.bf16.msra.mxu0 %v2021
        %2040 = vmatprep.subr.bf16.mxu0 0
        %2041 = vmatpush1.bf16.msra.mxu0 %v2020
        %2042 = vmatprep.subr.bf16.mxu0 0
        %2043 = vmatpush1.bf16.msra.mxu0 %v2019
        %2044 = vmatprep.subr.bf16.mxu0 0
        %2045 = vmatpush1.bf16.msra.mxu0 %v2018
        %2046 = vmatprep.subr.bf16.mxu0 0
        %2047 = vmatpush2.bf16.msra.mxu0 0
        %2048 = vmatprep.subr.bf16.mxu0 0
        %2049 = vmatpush2.bf16.msra.mxu0 0
        %2050 = vmatprep.subr.bf16.mxu0 0
        %2051 = vmatpush2.bf16.msra.mxu0 0
        %2052 = vmatprep.subr.bf16.mxu0 0
        %2053 = vmatpush2.bf16.msra.mxu0 0
        %2054 = vmatprep.subr.bf16.mxu0 0
        %2055 = vmatpush2.bf16.msra.mxu0 0
        %2056 = vmatprep.subr.bf16.mxu0 0
        %2057 = vmatpush2.bf16.msra.mxu0 0
        %2058 = vmatprep.subr.bf16.mxu0 0
        %2059 = vmatpush2.bf16.msra.mxu0 0
        %2060 = vmatprep.subr.bf16.mxu0 0
        %2061 = vmatpush2.bf16.msra.mxu0 0
        %2062 = vmatprep.mubr.bf16.mxu0 0
        %2063 = vmatmul.mubr.bf16.gmra.mxu0 %v2028
        %v2064 = vpop.f32.mrf.mxu0
        %v2065 = vadd.f32 %v2000, %v2064
        %v2066 = vpop.f32.mrf.mxu0
        %v2067 = vpop.f32.mrf.mxu0
        %v2068 = vadd.f32 %v2000, %v2067
        %v2069 = vpop.f32.mrf.mxu0
        %2070 = vdwg.mxu0
        %v2071 = vadd.f32 %v2065, %v1906
        %v2072 = vadd.f32 %v2068, %v1907
        %v2073 = vld [vmem:[%s730] sm:$0x1]
        %v2074 = vld [vmem:[%s733] sm:$0x1]
        %v2075 = vsel %vm815, %v2071, 0.0
        %2076 = vadd.xlane.f32.xlu0 %v2075
        %v2077 = vpop.xlane.xlu0 %2076
        %v2078 = vsel %vm815, %v2072, 0.0
        %2079 = vadd.xlane.f32.xlu0 %v2078
        %v2080 = vpop.xlane.xlu0 %2079
        %v2081 = vmul.f32 %v2077, %v1871
        %v2082 = vmul.f32 %v2080, %v1871
        %v2083 = vsub.f32 %v2071, %v2081
        %v2084 = vsub.f32 %v2072, %v2082
        %v2085 = vmul.f32 %v2083, %v2083
        %v2086 = vmul.f32 %v2084, %v2084
        %v2087 = vsel %vm815, %v2085, 0.0
        %2088 = vadd.xlane.f32.xlu0 %v2087
        %v2089 = vpop.xlane.xlu0 %2088
        %v2090 = vsel %vm815, %v2086, 0.0
        %2091 = vadd.xlane.f32.xlu0 %v2090
        %v2092 = vpop.xlane.xlu0 %2091
        %v2093 = vmul.f32 %v2089, %v1871
        %v2094 = vmul.f32 %v2092, %v1871
        %v2095 = vadd.f32 %v2093, 1e-12
        %v2096 = vadd.f32 %v2094, 1e-12
        %v2097 = vrsqrt.pop %v2095
        %v2098 = vrsqrt.pop %v2096
        %v2099 = vmul.f32 %v2083, %v2097
        %v2100 = vmul.f32 %v2084, %v2098
        %v2102 = vlaneseq
        %v2103 = vshrl.u32 %v2102, 7
        %v2104 = vsub.s32 0, %v2103
        %v2105 = vrot.slane %v2073, %v2104
        %v2107 = vmul.f32 %v2099, %v2105
        %v2108 = vmul.f32 %v2100, %v2105
        %v2110 = vlaneseq
        %v2111 = vshrl.u32 %v2110, 7
        %v2112 = vsub.s32 0, %v2111
        %v2113 = vrot.slane %v2074, %v2112
        %v2115 = vadd.f32 %v2107, %v2113
        %v2116 = vadd.f32 %v2108, %v2113
        %2117 = vst.msk [vmem:[#allocation2] sm:$0xff] %vm815, %v2115
        %2118 = vst.msk [vmem:[#allocation2 + $0x8] sm:$0xff] %vm815, %v2116
        %p2119 = scmp.eq.s32.totalorder %s30, 1
        // Predicated region
        $region97: #{bert_encoder_forward.1} parent=91 // pred_check
          %p2120 = pneg %p2119
        $region98: #{bert_encoder_forward.1} parent=91 // pred_check_branch
          %2122 = sbr.rel (%p2120) target = $region100
        $region99: #{bert_encoder_forward.1} parent=91 // pred_region
          %v2123 = vld [vmem:[#allocation2] ss:$8 sm:$0x3]
          %v2124 = vpack.c.bf16 %v2123, %v2123
          %v2125 = vld [vmem:[%s16] sm:$0xf]
          %v2126 = vld [vmem:[%s16 + $0x4] sm:$0xf]
          %v2127 = vld [vmem:[%s16 + $0x8] sm:$0xf]
          %v2128 = vld [vmem:[%s16 + $0xc] sm:$0xf]
          %v2129 = vld [vmem:[%s17] sm:$0x1]
          %v2131 = vlaneseq
          %v2132 = vshrl.u32 %v2131, 7
          %v2133 = vsub.s32 0, %v2132
          %v2134 = vrot.slane %v2129, %v2133
          %v2140 = vunpack.c.l.b16 %v2125
          %v2141 = vunpack.c.l.b16 %v2126
          %v2142 = vunpack.c.l.b16 %v2127
          %v2143 = vunpack.c.l.b16 %v2128
          %v2144 = vpack.c.b16 %v2141, %v2140
          %v2145 = vpack.c.b16 %v2143, %v2142
          %v2149 = vsel %vm815, %v2124, 0
          %2151 = vmatprep.subr.bf16.mxu0 0
          %2152 = vmatpush1.bf16.msra.mxu0 0
          %2153 = vmatprep.subr.bf16.mxu0 0
          %2154 = vmatpush1.bf16.msra.mxu0 0
          %2155 = vmatprep.subr.bf16.mxu0 0
          %2156 = vmatpush1.bf16.msra.mxu0 0
          %2157 = vmatprep.subr.bf16.mxu0 0
          %2158 = vmatpush1.bf16.msra.mxu0 0
          %2159 = vmatprep.subr.bf16.mxu0 0
          %2160 = vmatpush1.bf16.msra.mxu0 0
          %2161 = vmatprep.subr.bf16.mxu0 0
          %2162 = vmatpush1.bf16.msra.mxu0 0
          %2163 = vmatprep.subr.bf16.mxu0 0
          %2164 = vmatpush1.bf16.msra.mxu0 %v2145
          %2165 = vmatprep.subr.bf16.mxu0 0
          %2166 = vmatpush1.bf16.msra.mxu0 %v2144
          %2167 = vmatprep.subr.bf16.mxu0 0
          %2168 = vmatpush2.bf16.msra.mxu0 0
          %2169 = vmatprep.subr.bf16.mxu0 0
          %2170 = vmatpush2.bf16.msra.mxu0 0
          %2171 = vmatprep.subr.bf16.mxu0 0
          %2172 = vmatpush2.bf16.msra.mxu0 0
          %2173 = vmatprep.subr.bf16.mxu0 0
          %2174 = vmatpush2.bf16.msra.mxu0 0
          %2175 = vmatprep.subr.bf16.mxu0 0
          %2176 = vmatpush2.bf16.msra.mxu0 0
          %2177 = vmatprep.subr.bf16.mxu0 0
          %2178 = vmatpush2.bf16.msra.mxu0 0
          %2179 = vmatprep.subr.bf16.mxu0 0
          %2180 = vmatpush2.bf16.msra.mxu0 0
          %2181 = vmatprep.subr.bf16.mxu0 0
          %2182 = vmatpush2.bf16.msra.mxu0 0
          %2183 = vmatprep.mubr.bf16.mxu0 0
          %2184 = vmatmul.mubr.bf16.gmra.mxu0 %v2149
          %v2185 = vpop.f32.mrf.mxu0
          %v2186 = vadd.f32 %v2134, %v2185
          %v2187 = vpop.f32.mrf.mxu0
          %v2188 = vpop.f32.mrf.mxu0
          %v2189 = vpop.f32.mrf.mxu0
          %2190 = vdwg.mxu0
          %v2191 = vtanh.pop %v2186
          %vm2192 = vcmask 254976
          %2193 = vst.msk [vmem:[#allocation4] sm:$0x3] %vm2192, %v2191
        $region100: #{bert_encoder_forward.1} parent=91 // pred_fallthru
          _
        // Predicated region
        $region101: #{bert_encoder_forward.1} parent=91 // pred_check
          %p2194 = pneg %p481
        $region102: #{bert_encoder_forward.1} parent=91 // pred_check_branch
          %2196 = sbr.rel (%p2194) target = $region104
        $region103: #{bert_encoder_forward.1} parent=91 // pred_region
          %s2198 = ssub.s32 32, 32
          %2199 = vsyncadd [#allocation5], %s2198
          %s2201 = sshll.u32 [#allocation4], 4
          %s2202 = int_to_ptr.vmem [resolvable:$true] %s2201
          %2204 = dma.vmem_to_hbm [thread:$0]  %s2202, 32, %s18, [#allocation5]
        $region104: #{bert_encoder_forward.1} parent=91 // pred_fallthru
          _
        // Predicated region
        $region105: #{bert_encoder_forward.1} parent=91 // pred_check
          %p2205 = pneg %p481
        $region106: #{bert_encoder_forward.1} parent=91 // pred_check_branch
          %2207 = sbr.rel (%p2205) target = $region108
        $region107: #{bert_encoder_forward.1} parent=91 // pred_region
          %2208 = dma.done [#allocation5], 32
        $region108: #{bert_encoder_forward.1} parent=91 // pred_fallthru
          _
      $region92: #{bert_encoder_forward.1} parent=5 // pred_fallthru
        _
      %p2209 = scmp.le.s32.totalorder 2, %s25
      // Predicated region
      $region109: #{bert_encoder_forward.1} parent=5 // pred_check
        %p2210 = pneg %p2209
      $region110: #{bert_encoder_forward.1} parent=5 // pred_check_branch
        %2212 = sbr.rel (%p2210) target = $region112
      $region111: #{bert_encoder_forward.1} parent=5 // pred_region
        %s2213 = ssub.s32 %s25, 2
      $region112: #{bert_encoder_forward.1} parent=5 // pred_fallthru
        _
    $region6: #{bert_encoder_forward.1} parent=1 // loop_footer
      %s29 = sadd.s32 1, %s25
    $region7: #{bert_encoder_forward.1} parent=1 // loop_footer_branch
      %24 = sbr.rel target = $region3
    $region8: #{bert_encoder_forward.1} parent=1 // loop_exit
      _
    %2214 = vsyncpa [#allocation5], 1
    %s2215 = scalar_lea.sflag [#allocation5], 1
    %2216 = vsyncpa %s2215, 1

</llo_original>
